<compile_context>
chip_gen: v6e
topology: v6e:2x2x1
jax: 0.10.0
libtpu: 0.0.40
codegen_flags: <defaults>
</compile_context>

<pallas_src>
import jax
import jax.numpy as jnp
from jax.experimental import pallas as pl
from jax.experimental.pallas import tpu as pltpu


# ------------------------------- kernels ----------------------------------- #

def encoder_kernel(x_ref, w1_ref, b1_ref, w2_ref, b2_ref, w3_ref, b3_ref,
                   feat_ref):
    # x_ref    : (1, 3, TN) point tile, channel-major (channels on sublanes).
    # w1_ref   : (64, 3)    layer-1 weight (BN scale folded), f32, VPU layer.
    # w2_ref   : (64, 128)  layer-2 weight (BN scale folded), bf16, MXU RHS.
    # w3_ref   : (128, 256) layer-3 weight (BN scale folded), bf16, MXU RHS.
    # b*_ref   : folded BN biases.
    # feat_ref : (1, 1, 1, 256) resident partial max for this (batch, split).
    nt = pl.program_id(2)

    x = x_ref[0]                                               # (3, TN) f32
    w1 = w1_ref[...]                                           # (64, 3)

    # Layer 1 (K=3): three VPU broadcast FMAs, stays off the MXU.
    h = (w1[:, 0:1] * x[0:1, :] + w1[:, 1:2] * x[1:2, :]
         + w1[:, 2:3] * x[2:3, :])                             # (64, TN)
    h = jnp.maximum(h + b1_ref[...], 0.0)

    # One XLU transpose to point-major: the small weights become the
    # stationary MXU RHS, the TN points stream as the LHS.
    h = h.T.astype(jnp.bfloat16)                               # (TN, 64)

    h = jnp.dot(h, w2_ref[...], preferred_element_type=jnp.float32)   # (TN,128)
    h = jnp.maximum(h + b2_ref[...], 0.0)
    h = jnp.dot(h.astype(jnp.bfloat16), w3_ref[...],
                preferred_element_type=jnp.float32)                    # (TN,256)
    h = jnp.maximum(h + b3_ref[...], 0.0)

    # Max over this tile's points (sublane reduce) -> lane-dense 256 features.
    m = jnp.max(h, axis=0, keepdims=True)[None, None]          # (1,1,1,256)

    @pl.when(nt == 0)
    def _():
        feat_ref[...] = m

    @pl.when(nt > 0)
    def _():
        feat_ref[...] = jnp.maximum(feat_ref[...], m)


def decoder_kernel(feat_ref, w4_ref, b4_ref, w5_ref, b5_ref, w6_ref, b6_ref,
                   r_ref):
    # Combine partial maxes, run decoder MLP (256->128->64->6) and f2R.
    # feat_ref: (B, NSPLIT, 1, 256); r_ref: (B, 9) row-major flattened R.
    f4 = feat_ref[...]                                         # (B,NSPLIT,1,256)
    f = f4[:, 0, 0, :]                                         # (B, 256)
    for s in range(1, f4.shape[1]):                            # static unroll
        f = jnp.maximum(f, f4[:, s, 0, :])

    g = jnp.dot(f, w4_ref[...], preferred_element_type=jnp.float32)
    g = jnp.maximum(g + b4_ref[...], 0.0)                      # (B, 128)
    g = jnp.dot(g, w5_ref[...], preferred_element_type=jnp.float32)
    g = jnp.maximum(g + b5_ref[...], 0.0)                      # (B, 64)
    fv = (jnp.dot(g, w6_ref[...], preferred_element_type=jnp.float32)
          + b6_ref[...])                                       # (B, 6)

    # f2R (Gram-Schmidt + cross product); eps matches F.normalize default.
    eps = 1e-12
    a0, a1, a2 = fv[:, 0:1], fv[:, 1:2], fv[:, 2:3]
    c0, c1, c2 = fv[:, 3:4], fv[:, 4:5], fv[:, 5:6]
    da = jnp.maximum(jnp.sqrt(a0 * a0 + a1 * a1 + a2 * a2), eps)
    r10, r11, r12 = a0 / da, a1 / da, a2 / da                  # r1
    proj = r10 * c0 + r11 * c1 + r12 * c2
    u0, u1, u2 = c0 - proj * r10, c1 - proj * r11, c2 - proj * r12
    du = jnp.maximum(jnp.sqrt(u0 * u0 + u1 * u1 + u2 * u2), eps)
    r20, r21, r22 = u0 / du, u1 / du, u2 / du                  # r2
    r30 = r11 * r22 - r12 * r21                                # r3 = r1 x r2
    r31 = r12 * r20 - r10 * r22
    r32 = r10 * r21 - r11 * r20

    # R = stack([r1, r2, r3], axis=2); store its row-major flattening.
    r_ref[:, 0:1] = r10
    r_ref[:, 1:2] = r20
    r_ref[:, 2:3] = r30
    r_ref[:, 3:4] = r11
    r_ref[:, 4:5] = r21
    r_ref[:, 5:6] = r31
    r_ref[:, 6:7] = r12
    r_ref[:, 7:8] = r22
    r_ref[:, 8:9] = r32


def transform_kernel(r_ref, x_ref, out_ref):
    # out = R @ pts for one (large) point tile: three VPU column-broadcast FMAs.
    r = r_ref[0]                                               # (3, 3)
    x = x_ref[0]                                               # (3, TN2)
    out_ref[0] = (r[:, 0:1] * x[0:1, :] + r[:, 1:2] * x[1:2, :]
                  + r[:, 2:3] * x[2:3, :])


# ------------------------------- wrapper ------------------------------------ #

def _pick_tile(n, cap):
    # Largest multiple of 128 <= cap dividing n (or n itself when n <= cap).
    if n <= cap:
        return n
    t = (cap // 128) * 128
    while t >= 128:
        if n % t == 0:
            return t
        t -= 128
    return n  # unreachable: n is always a multiple of 128 here


def tnet_forward(pts, p):
    B, C, N = pts.shape
    assert C == 3
    pts = pts.astype(jnp.float32)

    # Pad the point axis to a multiple of 128 by replicating the last point:
    # duplicates never change the max-pool; padded columns are sliced off.
    Np = ((N + 127) // 128) * 128
    pts_p = pts if Np == N else jnp.pad(
        pts, ((0, 0), (0, 0), (0, Np - N)), mode="edge")

    TN = _pick_tile(Np, 4096)            # encoder point tile (~10 MiB/step max)
    NT = Np // TN
    NSPLIT = 2 if NT % 2 == 0 else 1     # v7x: second "parallel" grid axis
    NT_PER = NT // NSPLIT

    # Fold BatchNorm scales into the weights in f32; bf16 only for MXU layers.
    w1 = (p["w1"] * p["s1"]).T                               # (64, 3)   f32
    b1 = p["b1"].reshape(64, 1)
    w2 = (p["w2"] * p["s2"]).astype(jnp.bfloat16)            # (64, 128)
    b2 = p["b2"].reshape(1, 128)
    w3 = (p["w3"] * p["s3"]).astype(jnp.bfloat16)            # (128, 256)
    b3 = p["b3"].reshape(1, 256)
    w4 = p["w4"] * p["s4"]                                   # (256, 128) f32
    b4 = p["b4"].reshape(1, 128)
    w5 = p["w5"] * p["s5"]                                   # (128, 64)  f32
    b5 = p["b5"].reshape(1, 64)
    w6 = p["w6"]                                             # (64, 6)
    b6 = p["b6"].reshape(1, 6)

    vmem = 32 * 1024 * 1024
    const3 = lambda b, s, n: (0, 0)

    # Pass 1: shared per-point MLP + partial max-pool -> (B, NSPLIT, 1, 256).
    feat = pl.pallas_call(
        encoder_kernel,
        out_shape=jax.ShapeDtypeStruct((B, NSPLIT, 1, 256), jnp.float32),
        grid=(B, NSPLIT, NT_PER),
        in_specs=[
            pl.BlockSpec((1, 3, TN), lambda b, s, n: (b, 0, s * NT_PER + n)),
            pl.BlockSpec((64, 3), const3), pl.BlockSpec((64, 1), const3),
            pl.BlockSpec((64, 128), const3), pl.BlockSpec((1, 128), const3),
            pl.BlockSpec((128, 256), const3), pl.BlockSpec((1, 256), const3),
        ],
        out_specs=pl.BlockSpec((1, 1, 1, 256), lambda b, s, n: (b, s, 0, 0)),
        compiler_params=pltpu.CompilerParams(
            dimension_semantics=("parallel", "parallel", "arbitrary"),
            vmem_limit_bytes=vmem),
    )(pts_p, w1, b1, w2, b2, w3, b3)

    # Pass 2: one-shot decoder MLP + f2R over the whole batch -> (B, 3, 3).
    const1 = lambda i: (0, 0)
    r_flat = pl.pallas_call(
        decoder_kernel,
        out_shape=jax.ShapeDtypeStruct((B, 9), jnp.float32),
        grid=(1,),
        in_specs=[
            pl.BlockSpec((B, NSPLIT, 1, 256), lambda i: (0, 0, 0, 0)),
            pl.BlockSpec((256, 128), const1), pl.BlockSpec((1, 128), const1),
            pl.BlockSpec((128, 64), const1), pl.BlockSpec((1, 64), const1),
            pl.BlockSpec((64, 6), const1), pl.BlockSpec((1, 6), const1),
        ],
        out_specs=pl.BlockSpec((B, 9), const1),
        compiler_params=pltpu.CompilerParams(
            dimension_semantics=("arbitrary",), vmem_limit_bytes=vmem),
    )(feat, w4, b4, w5, b5, w6, b6)
    R = r_flat.reshape(B, 3, 3)

    # Pass 3: per-point rigid transform; large tiles, fully parallel grid.
    TN2 = _pick_tile(Np, 32768)
    out_p = pl.pallas_call(
        transform_kernel,
        out_shape=jax.ShapeDtypeStruct((B, 3, Np), jnp.float32),
        grid=(B, Np // TN2),
        in_specs=[
            pl.BlockSpec((1, 3, 3), lambda b, n: (b, 0, 0)),
            pl.BlockSpec((1, 3, TN2), lambda b, n: (b, 0, n)),
        ],
        out_specs=pl.BlockSpec((1, 3, TN2), lambda b, n: (b, 0, n)),
        compiler_params=pltpu.CompilerParams(
            dimension_semantics=("parallel", "parallel"),
            vmem_limit_bytes=vmem),
    )(R, pts_p)

    return out_p if Np == N else out_p[:, :, :N]               # (B, 3, N)


# ------------------------ deterministic parameters -------------------------- #

def init_params(key):
    ks = iter(jax.random.split(key, 27))
    nk = lambda: next(ks)

    def bn_fold(c):
        gamma = 1.0 + 0.1 * jax.random.normal(nk(), (c,), jnp.float32)
        beta = 0.1 * jax.random.normal(nk(), (c,), jnp.float32)
        mean = 0.1 * jax.random.normal(nk(), (c,), jnp.float32)
        var = 1.0 + 0.1 * jax.random.uniform(nk(), (c,), jnp.float32)
        scale = gamma / jnp.sqrt(var + 1e-5)     # BatchNorm eps
        bias = beta - mean * scale
        return scale.reshape(1, c), bias.reshape(1, c)

    def w(fan_in, fan_out):
        return (jax.random.normal(nk(), (fan_in, fan_out), jnp.float32)
                / jnp.sqrt(jnp.float32(fan_in)))

    p = {}
    p["w1"] = w(3, 64);     p["s1"], p["b1"] = bn_fold(64)
    p["w2"] = w(64, 128);   p["s2"], p["b2"] = bn_fold(128)
    p["w3"] = w(128, 256);  p["s3"], p["b3"] = bn_fold(256)
    p["w4"] = w(256, 128);  p["s4"], p["b4"] = bn_fold(128)
    p["w5"] = w(128, 64);   p["s5"], p["b5"] = bn_fold(64)
    p["w6"] = w(64, 6)
    p["b6"] = 0.1 * jax.random.normal(nk(), (1, 6), jnp.float32)
    return p


# ------------------------------ reference ----------------------------------- #

def f2R(f):
    eps = 1e-12                                  # F.normalize default eps
    a = f[:, :3]
    b = f[:, 3:]
    r1 = a / jnp.maximum(jnp.linalg.norm(a, axis=1, keepdims=True), eps)
    proj = jnp.sum(r1 * b, axis=1, keepdims=True)
    u = b - proj * r1
    r2 = u / jnp.maximum(jnp.linalg.norm(u, axis=1, keepdims=True), eps)
    r3 = jnp.cross(r1, r2)
    return jnp.stack([r1, r2, r3], axis=2)       # (B, 3, 3)


def tnet_reference(pts, p):
    x = jnp.transpose(pts, (0, 2, 1)).astype(jnp.float32)
    h = jnp.maximum(x @ p["w1"] * p["s1"] + p["b1"], 0.0)
    h = jnp.maximum(h @ p["w2"] * p["s2"] + p["b2"], 0.0)
    h = jnp.maximum(h @ p["w3"] * p["s3"] + p["b3"], 0.0)
    feat = jnp.max(h, axis=1)
    g = jnp.maximum(feat @ p["w4"] * p["s4"] + p["b4"], 0.0)
    g = jnp.maximum(g @ p["w5"] * p["s5"] + p["b5"], 0.0)
    f = g @ p["w6"] + p["b6"]
    R = f2R(f)
    return jnp.einsum("bij,bjn->bin", R, pts.astype(jnp.float32))


if __name__ == "__main__":
    key = jax.random.PRNGKey(0)
    pkey, xkey, xkey2 = jax.random.split(key, 3)
    params = init_params(pkey)

    fwd = jax.jit(tnet_forward)

    # Small smoke test (exercises the N-padding path: 16 -> 128 points).
    pts = jax.random.normal(xkey, (2, 3, 16), jnp.float32)        # (B, 3, N)
    out = jax.block_until_ready(fwd(pts, params))
    ref = tnet_reference(pts, params)
    assert out.shape == (2, 3, 16)
    assert bool(jnp.all(jnp.isfinite(out)))
    err = float(jnp.max(jnp.abs(out - ref)))
    assert bool(jnp.allclose(out, ref, rtol=2e-2, atol=2e-2)), err

    # Larger run: exercises the 2-way parallel point split (NSPLIT=2) and the
    # multi-tile running-max accumulation (NT_PER=2) in the encoder.
    pts_l = jax.random.normal(xkey2, (2, 3, 16384), jnp.float32)
    out_l = jax.block_until_ready(fwd(pts_l, params))
    ref_l = tnet_reference(pts_l, params)
    assert out_l.shape == (2, 3, 16384)
    assert bool(jnp.all(jnp.isfinite(out_l)))
    scale = max(1.0, float(jnp.max(jnp.abs(ref_l))))
    err_l = float(jnp.max(jnp.abs(out_l - ref_l)))
    assert err_l <= 2e-2 * scale, (err_l, scale)                  # bf16 layers

    print("KERNEL_OK")
</pallas_src>

<mosaic_0001>
module attributes {stable_mosaic.version = 11 : i64} {
  func.func @encoder_kernel(%arg0: i32, %arg1: i32, %arg2: i32, %arg3: memref<1x3x128xf32, #tpu.memory_space<vmem>>, %arg4: memref<64x3xf32, #tpu.memory_space<vmem>>, %arg5: memref<64x1xf32, #tpu.memory_space<vmem>>, %arg6: memref<64x128xbf16, #tpu.memory_space<vmem>>, %arg7: memref<1x128xf32, #tpu.memory_space<vmem>>, %arg8: memref<128x256xbf16, #tpu.memory_space<vmem>>, %arg9: memref<1x256xf32, #tpu.memory_space<vmem>>, %arg10: memref<1x1x1x256xf32, #tpu.memory_space<vmem>>) attributes {dimension_semantics = [#tpu.dimension_semantics<parallel>, #tpu.dimension_semantics<parallel>, #tpu.dimension_semantics<arbitrary>], iteration_bounds = array<i64: 2, 1, 1>, scalar_prefetch = 0 : i64, scratch_operands = 0 : i64, tpu.core_type = #tpu.core_type<tc>, window_params = [{transform_indices = @transform_0, window_bounds = array<i64: 1, 3, 128>}, {pipeline_mode = #tpu.pipeline_mode<synchronous>, transform_indices = @transform_1, window_bounds = array<i64: 64, 3>}, {pipeline_mode = #tpu.pipeline_mode<synchronous>, transform_indices = @transform_2, window_bounds = array<i64: 64, 1>}, {pipeline_mode = #tpu.pipeline_mode<synchronous>, transform_indices = @transform_3, window_bounds = array<i64: 64, 128>}, {pipeline_mode = #tpu.pipeline_mode<synchronous>, transform_indices = @transform_4, window_bounds = array<i64: 1, 128>}, {pipeline_mode = #tpu.pipeline_mode<synchronous>, transform_indices = @transform_5, window_bounds = array<i64: 128, 256>}, {pipeline_mode = #tpu.pipeline_mode<synchronous>, transform_indices = @transform_6, window_bounds = array<i64: 1, 256>}, {transform_indices = @transform_7, window_bounds = array<i64: 1, 1, 1, 256>}]} {
    %c0 = arith.constant 0 : index
    %c0_0 = arith.constant 0 : index
    %c0_1 = arith.constant 0 : index
    %0 = vector.load %arg3[%c0, %c0_0, %c0_1] : memref<1x3x128xf32, #tpu.memory_space<vmem>>, vector<1x3x128xf32>
    %1 = vector.shape_cast %0 : vector<1x3x128xf32> to vector<3x128xf32>
    %c0_2 = arith.constant 0 : index
    %c0_3 = arith.constant 0 : index
    %2 = vector.load %arg4[%c0_2, %c0_3] : memref<64x3xf32, #tpu.memory_space<vmem>>, vector<64x3xf32>
    %3 = vector.extract_strided_slice %2 {offsets = [0, 0], sizes = [64, 1], strides = [1, 1]} : vector<64x3xf32> to vector<64x1xf32>
    %4 = vector.extract_strided_slice %1 {offsets = [0, 0], sizes = [1, 128], strides = [1, 1]} : vector<3x128xf32> to vector<1x128xf32>
    %5 = vector.broadcast %3 : vector<64x1xf32> to vector<64x128xf32>
    %6 = vector.broadcast %4 : vector<1x128xf32> to vector<64x128xf32>
    %7 = arith.mulf %5, %6 : vector<64x128xf32>
    %8 = vector.extract_strided_slice %2 {offsets = [0, 1], sizes = [64, 1], strides = [1, 1]} : vector<64x3xf32> to vector<64x1xf32>
    %9 = vector.extract_strided_slice %1 {offsets = [1, 0], sizes = [1, 128], strides = [1, 1]} : vector<3x128xf32> to vector<1x128xf32>
    %10 = vector.broadcast %8 : vector<64x1xf32> to vector<64x128xf32>
    %11 = vector.broadcast %9 : vector<1x128xf32> to vector<64x128xf32>
    %12 = arith.mulf %10, %11 : vector<64x128xf32>
    %13 = arith.addf %7, %12 : vector<64x128xf32>
    %14 = vector.extract_strided_slice %2 {offsets = [0, 2], sizes = [64, 1], strides = [1, 1]} : vector<64x3xf32> to vector<64x1xf32>
    %15 = vector.extract_strided_slice %1 {offsets = [2, 0], sizes = [1, 128], strides = [1, 1]} : vector<3x128xf32> to vector<1x128xf32>
    %16 = vector.broadcast %14 : vector<64x1xf32> to vector<64x128xf32>
    %17 = vector.broadcast %15 : vector<1x128xf32> to vector<64x128xf32>
    %18 = arith.mulf %16, %17 : vector<64x128xf32>
    %19 = arith.addf %13, %18 : vector<64x128xf32>
    %c0_4 = arith.constant 0 : index
    %c0_5 = arith.constant 0 : index
    %20 = vector.load %arg5[%c0_4, %c0_5] : memref<64x1xf32, #tpu.memory_space<vmem>>, vector<64x1xf32>
    %21 = vector.broadcast %20 : vector<64x1xf32> to vector<64x128xf32>
    %22 = arith.addf %19, %21 : vector<64x128xf32>
    %cst = arith.constant 0.000000e+00 : f32
    %23 = vector.broadcast %cst : f32 to vector<64x128xf32>
    %24 = arith.maximumf %22, %23 : vector<64x128xf32>
    %25 = tpu.transpose %24, [1, 0] : vector<64x128xf32> -> vector<128x64xf32>
    %26 = arith.truncf %25 : vector<128x64xf32> to vector<128x64xbf16>
    %c0_6 = arith.constant 0 : index
    %c0_7 = arith.constant 0 : index
    %27 = vector.load %arg6[%c0_6, %c0_7] : memref<64x128xbf16, #tpu.memory_space<vmem>>, vector<64x128xbf16>
    %cst_8 = arith.constant dense<0.000000e+00> : vector<128x128xf32>
    %28 = tpu.matmul %26, %27, %cst_8 {dimension_numbers = #tpu.dot_dimension_numbers<[1], [0], [0], [1], [0, 0, 1, 1], [], []>} : vector<128x64xbf16>, vector<64x128xbf16>, vector<128x128xf32> -> vector<128x128xf32>
    %c0_9 = arith.constant 0 : index
    %c0_10 = arith.constant 0 : index
    %29 = vector.load %arg7[%c0_9, %c0_10] : memref<1x128xf32, #tpu.memory_space<vmem>>, vector<1x128xf32>
    %30 = vector.broadcast %29 : vector<1x128xf32> to vector<128x128xf32>
    %31 = arith.addf %28, %30 : vector<128x128xf32>
    %cst_11 = arith.constant 0.000000e+00 : f32
    %32 = vector.broadcast %cst_11 : f32 to vector<128x128xf32>
    %33 = arith.maximumf %31, %32 : vector<128x128xf32>
    %34 = arith.truncf %33 : vector<128x128xf32> to vector<128x128xbf16>
    %c0_12 = arith.constant 0 : index
    %c0_13 = arith.constant 0 : index
    %35 = vector.load %arg8[%c0_12, %c0_13] : memref<128x256xbf16, #tpu.memory_space<vmem>>, vector<128x256xbf16>
    %cst_14 = arith.constant dense<0.000000e+00> : vector<128x256xf32>
    %36 = tpu.matmul %34, %35, %cst_14 {dimension_numbers = #tpu.dot_dimension_numbers<[1], [0], [0], [1], [0, 0, 1, 1], [], []>} : vector<128x128xbf16>, vector<128x256xbf16>, vector<128x256xf32> -> vector<128x256xf32>
    %c0_15 = arith.constant 0 : index
    %c0_16 = arith.constant 0 : index
    %37 = vector.load %arg9[%c0_15, %c0_16] : memref<1x256xf32, #tpu.memory_space<vmem>>, vector<1x256xf32>
    %38 = vector.broadcast %37 : vector<1x256xf32> to vector<128x256xf32>
    %39 = arith.addf %36, %38 : vector<128x256xf32>
    %cst_17 = arith.constant 0.000000e+00 : f32
    %40 = vector.broadcast %cst_17 : f32 to vector<128x256xf32>
    %41 = arith.maximumf %39, %40 : vector<128x256xf32>
    %cst_18 = arith.constant dense<0xFF800000> : vector<256xf32>
    %42 = vector.multi_reduction <maximumf>, %41, %cst_18 [0] : vector<128x256xf32> to vector<256xf32>
    %43 = vector.shape_cast %42 : vector<256xf32> to vector<1x256xf32>
    %44 = vector.shape_cast %43 : vector<1x256xf32> to vector<1x1x1x256xf32>
    %c0_i32 = arith.constant 0 : i32
    %45 = arith.cmpi eq, %arg2, %c0_i32 : i32
    %46 = arith.extui %45 : i1 to i32
    %c0_i32_19 = arith.constant 0 : i32
    %47 = arith.cmpi ne, %46, %c0_i32_19 : i32
    scf.if %47 {
      %c0_22 = arith.constant 0 : index
      %c0_23 = arith.constant 0 : index
      %c0_24 = arith.constant 0 : index
      %c0_25 = arith.constant 0 : index
      %51 = vector.load %arg10[%c0_22, %c0_23, %c0_24, %c0_25] : memref<1x1x1x256xf32, #tpu.memory_space<vmem>>, vector<1x1x1x256xf32>
      tpu.vector_store %arg10[%c0_22, %c0_23, %c0_24, %c0_25], %44 {strides = array<i32>} : memref<1x1x1x256xf32, #tpu.memory_space<vmem>>, vector<1x1x1x256xf32>,
    } else {
    }
    %c0_i32_20 = arith.constant 0 : i32
    %48 = arith.cmpi sgt, %arg2, %c0_i32_20 : i32
    %49 = arith.extui %48 : i1 to i32
    %c0_i32_21 = arith.constant 0 : i32
    %50 = arith.cmpi ne, %49, %c0_i32_21 : i32
    scf.if %50 {
      %c0_22 = arith.constant 0 : index
      %c0_23 = arith.constant 0 : index
      %c0_24 = arith.constant 0 : index
      %c0_25 = arith.constant 0 : index
      %51 = vector.load %arg10[%c0_22, %c0_23, %c0_24, %c0_25] : memref<1x1x1x256xf32, #tpu.memory_space<vmem>>, vector<1x1x1x256xf32>
      %52 = arith.maximumf %51, %44 : vector<1x1x1x256xf32>
      %c0_26 = arith.constant 0 : index
      %c0_27 = arith.constant 0 : index
      %c0_28 = arith.constant 0 : index
      %c0_29 = arith.constant 0 : index
      %53 = vector.load %arg10[%c0_26, %c0_27, %c0_28, %c0_29] : memref<1x1x1x256xf32, #tpu.memory_space<vmem>>, vector<1x1x1x256xf32>
      tpu.vector_store %arg10[%c0_26, %c0_27, %c0_28, %c0_29], %52 {strides = array<i32>} : memref<1x1x1x256xf32, #tpu.memory_space<vmem>>, vector<1x1x1x256xf32>,
    } else {
    }
    return
  }
  func.func @transform_0(%arg0: i32, %arg1: i32, %arg2: i32) -> (i32, i32, i32) {
    %c1_i32 = arith.constant 1 : i32
    %0 = arith.muli %arg1, %c1_i32 : i32
    %1 = arith.addi %0, %arg2 : i32
    %c0_i32 = arith.constant 0 : i32
    %c0_i32_0 = arith.constant 0 : i32
    return %arg0, %c0_i32, %1 : i32, i32, i32
  }
  func.func @transform_1(%arg0: i32, %arg1: i32, %arg2: i32) -> (i32, i32) {
    %c0_i32 = arith.constant 0 : i32
    %c0_i32_0 = arith.constant 0 : i32
    %c0_i32_1 = arith.constant 0 : i32
    return %c0_i32, %c0_i32_0 : i32, i32
  }
  func.func @transform_2(%arg0: i32, %arg1: i32, %arg2: i32) -> (i32, i32) {
    %c0_i32 = arith.constant 0 : i32
    %c0_i32_0 = arith.constant 0 : i32
    %c0_i32_1 = arith.constant 0 : i32
    return %c0_i32, %c0_i32_0 : i32, i32
  }
  func.func @transform_3(%arg0: i32, %arg1: i32, %arg2: i32) -> (i32, i32) {
    %c0_i32 = arith.constant 0 : i32
    %c0_i32_0 = arith.constant 0 : i32
    %c0_i32_1 = arith.constant 0 : i32
    return %c0_i32, %c0_i32_0 : i32, i32
  }
  func.func @transform_4(%arg0: i32, %arg1: i32, %arg2: i32) -> (i32, i32) {
    %c0_i32 = arith.constant 0 : i32
    %c0_i32_0 = arith.constant 0 : i32
    %c0_i32_1 = arith.constant 0 : i32
    return %c0_i32, %c0_i32_0 : i32, i32
  }
  func.func @transform_5(%arg0: i32, %arg1: i32, %arg2: i32) -> (i32, i32) {
    %c0_i32 = arith.constant 0 : i32
    %c0_i32_0 = arith.constant 0 : i32
    %c0_i32_1 = arith.constant 0 : i32
    return %c0_i32, %c0_i32_0 : i32, i32
  }
  func.func @transform_6(%arg0: i32, %arg1: i32, %arg2: i32) -> (i32, i32) {
    %c0_i32 = arith.constant 0 : i32
    %c0_i32_0 = arith.constant 0 : i32
    %c0_i32_1 = arith.constant 0 : i32
    return %c0_i32, %c0_i32_0 : i32, i32
  }
  func.func @transform_7(%arg0: i32, %arg1: i32, %arg2: i32) -> (i32, i32, i32, i32) {
    %c0_i32 = arith.constant 0 : i32
    %c0_i32_0 = arith.constant 0 : i32
    %c0_i32_1 = arith.constant 0 : i32
    return %arg0, %arg1, %c0_i32, %c0_i32_0 : i32, i32, i32, i32
  }
}

module attributes {stable_mosaic.version = 11 : i64} {
  func.func @decoder_kernel(%arg0: i32, %arg1: memref<2x1x1x256xf32, #tpu.memory_space<vmem>>, %arg2: memref<256x128xf32, #tpu.memory_space<vmem>>, %arg3: memref<1x128xf32, #tpu.memory_space<vmem>>, %arg4: memref<128x64xf32, #tpu.memory_space<vmem>>, %arg5: memref<1x64xf32, #tpu.memory_space<vmem>>, %arg6: memref<64x6xf32, #tpu.memory_space<vmem>>, %arg7: memref<1x6xf32, #tpu.memory_space<vmem>>, %arg8: memref<2x9xf32, #tpu.memory_space<vmem>>) attributes {dimension_semantics = [#tpu.dimension_semantics<arbitrary>], iteration_bounds = array<i64: 1>, scalar_prefetch = 0 : i64, scratch_operands = 0 : i64, tpu.core_type = #tpu.core_type<tc>, window_params = [{pipeline_mode = #tpu.pipeline_mode<synchronous>, transform_indices = @transform_0, window_bounds = array<i64: 2, 1, 1, 256>}, {pipeline_mode = #tpu.pipeline_mode<synchronous>, transform_indices = @transform_1, window_bounds = array<i64: 256, 128>}, {pipeline_mode = #tpu.pipeline_mode<synchronous>, transform_indices = @transform_2, window_bounds = array<i64: 1, 128>}, {pipeline_mode = #tpu.pipeline_mode<synchronous>, transform_indices = @transform_3, window_bounds = array<i64: 128, 64>}, {pipeline_mode = #tpu.pipeline_mode<synchronous>, transform_indices = @transform_4, window_bounds = array<i64: 1, 64>}, {pipeline_mode = #tpu.pipeline_mode<synchronous>, transform_indices = @transform_5, window_bounds = array<i64: 64, 6>}, {pipeline_mode = #tpu.pipeline_mode<synchronous>, transform_indices = @transform_6, window_bounds = array<i64: 1, 6>}, {pipeline_mode = #tpu.pipeline_mode<synchronous>, transform_indices = @transform_7, window_bounds = array<i64: 2, 9>}]} {
    %c0 = arith.constant 0 : index
    %c0_0 = arith.constant 0 : index
    %c0_1 = arith.constant 0 : index
    %c0_2 = arith.constant 0 : index
    %0 = vector.load %arg1[%c0, %c0_0, %c0_1, %c0_2] : memref<2x1x1x256xf32, #tpu.memory_space<vmem>>, vector<2x1x1x256xf32>
    %1 = vector.shape_cast %0 : vector<2x1x1x256xf32> to vector<2x256xf32>
    %c0_3 = arith.constant 0 : index
    %c0_4 = arith.constant 0 : index
    %2 = vector.load %arg2[%c0_3, %c0_4] : memref<256x128xf32, #tpu.memory_space<vmem>>, vector<256x128xf32>
    %cst = arith.constant dense<0.000000e+00> : vector<2x128xf32>
    %3 = tpu.matmul %1, %2, %cst {dimension_numbers = #tpu.dot_dimension_numbers<[1], [0], [0], [1], [0, 0, 1, 1], [], []>} : vector<2x256xf32>, vector<256x128xf32>, vector<2x128xf32> -> vector<2x128xf32>
    %c0_5 = arith.constant 0 : index
    %c0_6 = arith.constant 0 : index
    %4 = vector.load %arg3[%c0_5, %c0_6] : memref<1x128xf32, #tpu.memory_space<vmem>>, vector<1x128xf32>
    %5 = vector.broadcast %4 : vector<1x128xf32> to vector<2x128xf32>
    %6 = arith.addf %3, %5 : vector<2x128xf32>
    %cst_7 = arith.constant 0.000000e+00 : f32
    %7 = vector.broadcast %cst_7 : f32 to vector<2x128xf32>
    %8 = arith.maximumf %6, %7 : vector<2x128xf32>
    %c0_8 = arith.constant 0 : index
    %c0_9 = arith.constant 0 : index
    %9 = vector.load %arg4[%c0_8, %c0_9] : memref<128x64xf32, #tpu.memory_space<vmem>>, vector<128x64xf32>
    %cst_10 = arith.constant dense<0.000000e+00> : vector<2x64xf32>
    %10 = tpu.matmul %8, %9, %cst_10 {dimension_numbers = #tpu.dot_dimension_numbers<[1], [0], [0], [1], [0, 0, 1, 1], [], []>} : vector<2x128xf32>, vector<128x64xf32>, vector<2x64xf32> -> vector<2x64xf32>
    %c0_11 = arith.constant 0 : index
    %c0_12 = arith.constant 0 : index
    %11 = vector.load %arg5[%c0_11, %c0_12] : memref<1x64xf32, #tpu.memory_space<vmem>>, vector<1x64xf32>
    %12 = vector.broadcast %11 : vector<1x64xf32> to vector<2x64xf32>
    %13 = arith.addf %10, %12 : vector<2x64xf32>
    %cst_13 = arith.constant 0.000000e+00 : f32
    %14 = vector.broadcast %cst_13 : f32 to vector<2x64xf32>
    %15 = arith.maximumf %13, %14 : vector<2x64xf32>
    %c0_14 = arith.constant 0 : index
    %c0_15 = arith.constant 0 : index
    %16 = vector.load %arg6[%c0_14, %c0_15] : memref<64x6xf32, #tpu.memory_space<vmem>>, vector<64x6xf32>
    %cst_16 = arith.constant dense<0.000000e+00> : vector<2x6xf32>
    %17 = tpu.matmul %15, %16, %cst_16 {dimension_numbers = #tpu.dot_dimension_numbers<[1], [0], [0], [1], [0, 0, 1, 1], [], []>} : vector<2x64xf32>, vector<64x6xf32>, vector<2x6xf32> -> vector<2x6xf32>
    %c0_17 = arith.constant 0 : index
    %c0_18 = arith.constant 0 : index
    %18 = vector.load %arg7[%c0_17, %c0_18] : memref<1x6xf32, #tpu.memory_space<vmem>>, vector<1x6xf32>
    %19 = vector.broadcast %18 : vector<1x6xf32> to vector<2x6xf32>
    %20 = arith.addf %17, %19 : vector<2x6xf32>
    %21 = vector.extract_strided_slice %20 {offsets = [0, 0], sizes = [2, 1], strides = [1, 1]} : vector<2x6xf32> to vector<2x1xf32>
    %22 = vector.extract_strided_slice %20 {offsets = [0, 1], sizes = [2, 1], strides = [1, 1]} : vector<2x6xf32> to vector<2x1xf32>
    %23 = vector.extract_strided_slice %20 {offsets = [0, 2], sizes = [2, 1], strides = [1, 1]} : vector<2x6xf32> to vector<2x1xf32>
    %24 = vector.extract_strided_slice %20 {offsets = [0, 3], sizes = [2, 1], strides = [1, 1]} : vector<2x6xf32> to vector<2x1xf32>
    %25 = vector.extract_strided_slice %20 {offsets = [0, 4], sizes = [2, 1], strides = [1, 1]} : vector<2x6xf32> to vector<2x1xf32>
    %26 = vector.extract_strided_slice %20 {offsets = [0, 5], sizes = [2, 1], strides = [1, 1]} : vector<2x6xf32> to vector<2x1xf32>
    %27 = arith.mulf %21, %21 : vector<2x1xf32>
    %28 = arith.mulf %22, %22 : vector<2x1xf32>
    %29 = arith.addf %27, %28 : vector<2x1xf32>
    %30 = arith.mulf %23, %23 : vector<2x1xf32>
    %31 = arith.addf %29, %30 : vector<2x1xf32>
    %32 = math.sqrt %31 : vector<2x1xf32>
    %cst_19 = arith.constant 9.99999996E-13 : f32
    %33 = vector.broadcast %cst_19 : f32 to vector<2x1xf32>
    %34 = arith.maximumf %32, %33 : vector<2x1xf32>
    %35 = arith.divf %21, %34 : vector<2x1xf32>
    %36 = arith.divf %22, %34 : vector<2x1xf32>
    %37 = arith.divf %23, %34 : vector<2x1xf32>
    %38 = arith.mulf %35, %24 : vector<2x1xf32>
    %39 = arith.mulf %36, %25 : vector<2x1xf32>
    %40 = arith.addf %38, %39 : vector<2x1xf32>
    %41 = arith.mulf %37, %26 : vector<2x1xf32>
    %42 = arith.addf %40, %41 : vector<2x1xf32>
    %43 = arith.mulf %42, %35 : vector<2x1xf32>
    %44 = arith.subf %24, %43 : vector<2x1xf32>
    %45 = arith.mulf %42, %36 : vector<2x1xf32>
    %46 = arith.subf %25, %45 : vector<2x1xf32>
    %47 = arith.mulf %42, %37 : vector<2x1xf32>
    %48 = arith.subf %26, %47 : vector<2x1xf32>
    %49 = arith.mulf %44, %44 : vector<2x1xf32>
    %50 = arith.mulf %46, %46 : vector<2x1xf32>
    %51 = arith.addf %49, %50 : vector<2x1xf32>
    %52 = arith.mulf %48, %48 : vector<2x1xf32>
    %53 = arith.addf %51, %52 : vector<2x1xf32>
    %54 = math.sqrt %53 : vector<2x1xf32>
    %cst_20 = arith.constant 9.99999996E-13 : f32
    %55 = vector.broadcast %cst_20 : f32 to vector<2x1xf32>
    %56 = arith.maximumf %54, %55 : vector<2x1xf32>
    %57 = arith.divf %44, %56 : vector<2x1xf32>
    %58 = arith.divf %46, %56 : vector<2x1xf32>
    %59 = arith.divf %48, %56 : vector<2x1xf32>
    %60 = arith.mulf %36, %59 : vector<2x1xf32>
    %61 = arith.mulf %37, %58 : vector<2x1xf32>
    %62 = arith.subf %60, %61 : vector<2x1xf32>
    %63 = arith.mulf %37, %57 : vector<2x1xf32>
    %64 = arith.mulf %35, %59 : vector<2x1xf32>
    %65 = arith.subf %63, %64 : vector<2x1xf32>
    %66 = arith.mulf %35, %58 : vector<2x1xf32>
    %67 = arith.mulf %36, %57 : vector<2x1xf32>
    %68 = arith.subf %66, %67 : vector<2x1xf32>
    %c0_21 = arith.constant 0 : index
    %c0_22 = arith.constant 0 : index
    %69 = vector.load %arg8[%c0_21, %c0_22] : memref<2x9xf32, #tpu.memory_space<vmem>>, vector<2x1xf32>
    tpu.vector_store %arg8[%c0_21, %c0_22], %35 {strides = array<i32>} : memref<2x9xf32, #tpu.memory_space<vmem>>, vector<2x1xf32>,
    %c0_23 = arith.constant 0 : index
    %c1 = arith.constant 1 : index
    %70 = vector.load %arg8[%c0_23, %c1] : memref<2x9xf32, #tpu.memory_space<vmem>>, vector<2x1xf32>
    tpu.vector_store %arg8[%c0_23, %c1], %57 {strides = array<i32>} : memref<2x9xf32, #tpu.memory_space<vmem>>, vector<2x1xf32>,
    %c0_24 = arith.constant 0 : index
    %c2 = arith.constant 2 : index
    %71 = vector.load %arg8[%c0_24, %c2] : memref<2x9xf32, #tpu.memory_space<vmem>>, vector<2x1xf32>
    tpu.vector_store %arg8[%c0_24, %c2], %62 {strides = array<i32>} : memref<2x9xf32, #tpu.memory_space<vmem>>, vector<2x1xf32>,
    %c0_25 = arith.constant 0 : index
    %c3 = arith.constant 3 : index
    %72 = vector.load %arg8[%c0_25, %c3] : memref<2x9xf32, #tpu.memory_space<vmem>>, vector<2x1xf32>
    tpu.vector_store %arg8[%c0_25, %c3], %36 {strides = array<i32>} : memref<2x9xf32, #tpu.memory_space<vmem>>, vector<2x1xf32>,
    %c0_26 = arith.constant 0 : index
    %c4 = arith.constant 4 : index
    %73 = vector.load %arg8[%c0_26, %c4] : memref<2x9xf32, #tpu.memory_space<vmem>>, vector<2x1xf32>
    tpu.vector_store %arg8[%c0_26, %c4], %58 {strides = array<i32>} : memref<2x9xf32, #tpu.memory_space<vmem>>, vector<2x1xf32>,
    %c0_27 = arith.constant 0 : index
    %c5 = arith.constant 5 : index
    %74 = vector.load %arg8[%c0_27, %c5] : memref<2x9xf32, #tpu.memory_space<vmem>>, vector<2x1xf32>
    tpu.vector_store %arg8[%c0_27, %c5], %65 {strides = array<i32>} : memref<2x9xf32, #tpu.memory_space<vmem>>, vector<2x1xf32>,
    %c0_28 = arith.constant 0 : index
    %c6 = arith.constant 6 : index
    %75 = vector.load %arg8[%c0_28, %c6] : memref<2x9xf32, #tpu.memory_space<vmem>>, vector<2x1xf32>
    tpu.vector_store %arg8[%c0_28, %c6], %37 {strides = array<i32>} : memref<2x9xf32, #tpu.memory_space<vmem>>, vector<2x1xf32>,
    %c0_29 = arith.constant 0 : index
    %c7 = arith.constant 7 : index
    %76 = vector.load %arg8[%c0_29, %c7] : memref<2x9xf32, #tpu.memory_space<vmem>>, vector<2x1xf32>
    tpu.vector_store %arg8[%c0_29, %c7], %59 {strides = array<i32>} : memref<2x9xf32, #tpu.memory_space<vmem>>, vector<2x1xf32>,
    %c0_30 = arith.constant 0 : index
    %c8 = arith.constant 8 : index
    %77 = vector.load %arg8[%c0_30, %c8] : memref<2x9xf32, #tpu.memory_space<vmem>>, vector<2x1xf32>
    tpu.vector_store %arg8[%c0_30, %c8], %68 {strides = array<i32>} : memref<2x9xf32, #tpu.memory_space<vmem>>, vector<2x1xf32>,
    return
  }
  func.func @transform_0(%arg0: i32) -> (i32, i32, i32, i32) {
    %c0_i32 = arith.constant 0 : i32
    %c0_i32_0 = arith.constant 0 : i32
    %c0_i32_1 = arith.constant 0 : i32
    %c0_i32_2 = arith.constant 0 : i32
    %c0_i32_3 = arith.constant 0 : i32
    return %c0_i32, %c0_i32_0, %c0_i32_1, %c0_i32_2 : i32, i32, i32, i32
  }
  func.func @transform_1(%arg0: i32) -> (i32, i32) {
    %c0_i32 = arith.constant 0 : i32
    %c0_i32_0 = arith.constant 0 : i32
    %c0_i32_1 = arith.constant 0 : i32
    return %c0_i32, %c0_i32_0 : i32, i32
  }
  func.func @transform_2(%arg0: i32) -> (i32, i32) {
    %c0_i32 = arith.constant 0 : i32
    %c0_i32_0 = arith.constant 0 : i32
    %c0_i32_1 = arith.constant 0 : i32
    return %c0_i32, %c0_i32_0 : i32, i32
  }
  func.func @transform_3(%arg0: i32) -> (i32, i32) {
    %c0_i32 = arith.constant 0 : i32
    %c0_i32_0 = arith.constant 0 : i32
    %c0_i32_1 = arith.constant 0 : i32
    return %c0_i32, %c0_i32_0 : i32, i32
  }
  func.func @transform_4(%arg0: i32) -> (i32, i32) {
    %c0_i32 = arith.constant 0 : i32
    %c0_i32_0 = arith.constant 0 : i32
    %c0_i32_1 = arith.constant 0 : i32
    return %c0_i32, %c0_i32_0 : i32, i32
  }
  func.func @transform_5(%arg0: i32) -> (i32, i32) {
    %c0_i32 = arith.constant 0 : i32
    %c0_i32_0 = arith.constant 0 : i32
    %c0_i32_1 = arith.constant 0 : i32
    return %c0_i32, %c0_i32_0 : i32, i32
  }
  func.func @transform_6(%arg0: i32) -> (i32, i32) {
    %c0_i32 = arith.constant 0 : i32
    %c0_i32_0 = arith.constant 0 : i32
    %c0_i32_1 = arith.constant 0 : i32
    return %c0_i32, %c0_i32_0 : i32, i32
  }
  func.func @transform_7(%arg0: i32) -> (i32, i32) {
    %c0_i32 = arith.constant 0 : i32
    %c0_i32_0 = arith.constant 0 : i32
    %c0_i32_1 = arith.constant 0 : i32
    return %c0_i32, %c0_i32_0 : i32, i32
  }
}

module attributes {stable_mosaic.version = 11 : i64} {
  func.func @transform_kernel(%arg0: i32, %arg1: i32, %arg2: memref<1x3x3xf32, #tpu.memory_space<vmem>>, %arg3: memref<1x3x128xf32, #tpu.memory_space<vmem>>, %arg4: memref<1x3x128xf32, #tpu.memory_space<vmem>>) attributes {dimension_semantics = [#tpu.dimension_semantics<parallel>, #tpu.dimension_semantics<parallel>], iteration_bounds = array<i64: 2, 1>, scalar_prefetch = 0 : i64, scratch_operands = 0 : i64, tpu.core_type = #tpu.core_type<tc>, window_params = [{transform_indices = @transform_0, window_bounds = array<i64: 1, 3, 3>}, {transform_indices = @transform_1, window_bounds = array<i64: 1, 3, 128>}, {transform_indices = @transform_2, window_bounds = array<i64: 1, 3, 128>}]} {
    %c0 = arith.constant 0 : index
    %c0_0 = arith.constant 0 : index
    %c0_1 = arith.constant 0 : index
    %0 = vector.load %arg2[%c0, %c0_0, %c0_1] : memref<1x3x3xf32, #tpu.memory_space<vmem>>, vector<1x3x3xf32>
    %1 = vector.shape_cast %0 : vector<1x3x3xf32> to vector<3x3xf32>
    %c0_2 = arith.constant 0 : index
    %c0_3 = arith.constant 0 : index
    %c0_4 = arith.constant 0 : index
    %2 = vector.load %arg3[%c0_2, %c0_3, %c0_4] : memref<1x3x128xf32, #tpu.memory_space<vmem>>, vector<1x3x128xf32>
    %3 = vector.shape_cast %2 : vector<1x3x128xf32> to vector<3x128xf32>
    %4 = vector.extract_strided_slice %1 {offsets = [0, 0], sizes = [3, 1], strides = [1, 1]} : vector<3x3xf32> to vector<3x1xf32>
    %5 = vector.extract_strided_slice %3 {offsets = [0, 0], sizes = [1, 128], strides = [1, 1]} : vector<3x128xf32> to vector<1x128xf32>
    %6 = vector.broadcast %4 : vector<3x1xf32> to vector<3x128xf32>
    %7 = vector.broadcast %5 : vector<1x128xf32> to vector<3x128xf32>
    %8 = arith.mulf %6, %7 : vector<3x128xf32>
    %9 = vector.extract_strided_slice %1 {offsets = [0, 1], sizes = [3, 1], strides = [1, 1]} : vector<3x3xf32> to vector<3x1xf32>
    %10 = vector.extract_strided_slice %3 {offsets = [1, 0], sizes = [1, 128], strides = [1, 1]} : vector<3x128xf32> to vector<1x128xf32>
    %11 = vector.broadcast %9 : vector<3x1xf32> to vector<3x128xf32>
    %12 = vector.broadcast %10 : vector<1x128xf32> to vector<3x128xf32>
    %13 = arith.mulf %11, %12 : vector<3x128xf32>
    %14 = arith.addf %8, %13 : vector<3x128xf32>
    %15 = vector.extract_strided_slice %1 {offsets = [0, 2], sizes = [3, 1], strides = [1, 1]} : vector<3x3xf32> to vector<3x1xf32>
    %16 = vector.extract_strided_slice %3 {offsets = [2, 0], sizes = [1, 128], strides = [1, 1]} : vector<3x128xf32> to vector<1x128xf32>
    %17 = vector.broadcast %15 : vector<3x1xf32> to vector<3x128xf32>
    %18 = vector.broadcast %16 : vector<1x128xf32> to vector<3x128xf32>
    %19 = arith.mulf %17, %18 : vector<3x128xf32>
    %20 = arith.addf %14, %19 : vector<3x128xf32>
    %c0_5 = arith.constant 0 : index
    %c0_6 = arith.constant 0 : index
    %c0_7 = arith.constant 0 : index
    %21 = vector.load %arg4[%c0_5, %c0_6, %c0_7] : memref<1x3x128xf32, #tpu.memory_space<vmem>>, vector<1x3x128xf32>
    %22 = vector.shape_cast %21 : vector<1x3x128xf32> to vector<3x128xf32>
    %23 = vector.shape_cast %20 : vector<3x128xf32> to vector<1x3x128xf32>
    tpu.vector_store %arg4[%c0_5, %c0_6, %c0_7], %23 {strides = array<i32>} : memref<1x3x128xf32, #tpu.memory_space<vmem>>, vector<1x3x128xf32>,
    return
  }
  func.func @transform_0(%arg0: i32, %arg1: i32) -> (i32, i32, i32) {
    %c0_i32 = arith.constant 0 : i32
    %c0_i32_0 = arith.constant 0 : i32
    %c0_i32_1 = arith.constant 0 : i32
    return %arg0, %c0_i32, %c0_i32_0 : i32, i32, i32
  }
  func.func @transform_1(%arg0: i32, %arg1: i32) -> (i32, i32, i32) {
    %c0_i32 = arith.constant 0 : i32
    %c0_i32_0 = arith.constant 0 : i32
    return %arg0, %c0_i32, %arg1 : i32, i32, i32
  }
  func.func @transform_2(%arg0: i32, %arg1: i32) -> (i32, i32, i32) {
    %c0_i32 = arith.constant 0 : i32
    %c0_i32_0 = arith.constant 0 : i32
    return %arg0, %c0_i32, %arg1 : i32, i32, i32
  }
}

</mosaic_0001>

<llo_original>
// kernel: tnet_forward.5
$region0: #{tnet_forward.5}
  #allocation0 [shape = 'u32[]', space=smem, size = 0x4, offset = 0x4, fixed_abs, tag = 'smem constant byte address 0x4 - core index']
  #allocation1 [shape = 'u32[144,128]{1,0:T(1,128)}', space=vmem, size = 0x12000, scoped, tag = 'internal scratch']
  %s0 = inlined_call_operand.vmem [shape: f32[2,3,3], index: 0, kind: input, shape index: {}]
  %s1 = inlined_call_operand.vmem [shape: f32[2,3,128], index: 1, kind: input, shape index: {}]
  %s2 = inlined_call_operand.vmem [shape: f32[2,3,128], index: 2, kind: output, shape index: {}]
  %s3 = sld [smem:[#allocation0]]
  $region41: #{tnet_forward.5} parent=0
    _
  %s5 = ssub.s32 1, %s3
  %s6 = scalar_select 0, %s5, %s3
  loop: start=0, step=1, limit=4
  $region2: #{tnet_forward.5} parent=0 // loop_pre_header
    _
  $region3: #{tnet_forward.5} parent=0 // loop_header
    %s8 = sphi 0, %s12
    %p9 = scmp.ge.s32.totalorder %s8, 4
    %s15 = sphi 0, %s27
    %s16 = sphi 0, %s23
    %s17 = sphi 0, %s15
    %s18 = sphi 0, %s16
    %s19 = sphi 0, %s17
    %s20 = sphi 0, %s18
    %s30 = sphi 0, %s32
    %s33 = sphi 0, %s30
    %s34 = sphi 0, %s33
    %s50 = sphi 0, %s34
    %s58 = sphi 0, %s60
    %s61 = sphi 0, %s58
    %s62 = sphi 0, %s61
    %s78 = sphi 0, %s62
    %s86 = sphi 0, %s88
    %s89 = sphi 0, %s86
    %s90 = sphi 0, %s89
    %s106 = sphi 0, %s90
  $region4: #{tnet_forward.5} parent=0 // loop_header_branch
    %11 = sbr.rel (%p9) target = $region8
  $region5: #{tnet_forward.5} parent=0 // loop_body
    %s13 = ssub.s32 %s8, 1
    %s14 = ssub.s32 %s8, 2
    %s21 = sadd.s32 1, %s16
    %p22 = scmp.ge.s32.totalorder %s21, 1
    %s23 = scalar_select %p22, 0, %s21
    %s24 = sadd.s32 1, %s15
    %s25 = scalar_select %p22, %s24, %s15
    %p26 = scmp.ge.s32.totalorder %s25, 2
    %s27 = scalar_select %p26, 0, %s25
    %s28 = ssub.s32 %s15, %s27
    %p29 = scmp.eq.s32.totalorder %s28, 0
    %s31 = sadd.s32 %s30, 1
    %s32 = scalar_select %p29, %s30, %s31
    %p35 = pneg %p29
    %p36 = scmp.eq.s32.totalorder %s8, 1
    %p37 = por %p35, %p36
    %p38 = scmp.ne.s32.totalorder %s30, %s33
    %p39 = scmp.eq.s32.totalorder %s8, 0
    %p40 = por %p38, %p39
    %p41 = scmp.ne.s32.totalorder %s30, %s33
    %p42 = scmp.eq.s32.totalorder %s13, 1
    %p43 = por %p41, %p42
    %p44 = scmp.ne.s32.totalorder %s33, %s34
    %p45 = scmp.eq.s32.totalorder %s13, 0
    %p46 = por %p44, %p45
    %p47 = scmp.ne.s32.totalorder %s33, %s34
    %p48 = scmp.eq.s32.totalorder %s14, 1
    %p49 = por %p47, %p48
    %p51 = scmp.ne.s32.totalorder %s34, %s50
    %p52 = scmp.eq.s32.totalorder %s14, 0
    %p53 = por %p51, %p52
    %s54 = ssub.s32 %s15, %s27
    %s55 = ssub.s32 %s16, %s23
    %s56 = sor.u32 %s54, %s55
    %p57 = scmp.eq.s32.totalorder %s56, 0
    %s59 = sadd.s32 %s58, 1
    %s60 = scalar_select %p57, %s58, %s59
    %p63 = pneg %p57
    %p64 = scmp.eq.s32.totalorder %s8, 1
    %p65 = por %p63, %p64
    %p66 = scmp.ne.s32.totalorder %s58, %s61
    %p67 = scmp.eq.s32.totalorder %s8, 0
    %p68 = por %p66, %p67
    %p69 = scmp.ne.s32.totalorder %s58, %s61
    %p70 = scmp.eq.s32.totalorder %s13, 1
    %p71 = por %p69, %p70
    %p72 = scmp.ne.s32.totalorder %s61, %s62
    %p73 = scmp.eq.s32.totalorder %s13, 0
    %p74 = por %p72, %p73
    %p75 = scmp.ne.s32.totalorder %s61, %s62
    %p76 = scmp.eq.s32.totalorder %s14, 1
    %p77 = por %p75, %p76
    %p79 = scmp.ne.s32.totalorder %s62, %s78
    %p80 = scmp.eq.s32.totalorder %s14, 0
    %p81 = por %p79, %p80
    %s82 = ssub.s32 %s15, %s27
    %s83 = ssub.s32 %s16, %s23
    %s84 = sor.u32 %s82, %s83
    %p85 = scmp.eq.s32.totalorder %s84, 0
    %s87 = sadd.s32 %s86, 1
    %s88 = scalar_select %p85, %s86, %s87
    %p91 = pneg %p85
    %p92 = scmp.eq.s32.totalorder %s8, 1
    %p93 = por %p91, %p92
    %p94 = scmp.ne.s32.totalorder %s86, %s89
    %p95 = scmp.eq.s32.totalorder %s8, 0
    %p96 = por %p94, %p95
    %p97 = scmp.ne.s32.totalorder %s86, %s89
    %p98 = scmp.eq.s32.totalorder %s13, 1
    %p99 = por %p97, %p98
    %p100 = scmp.ne.s32.totalorder %s89, %s90
    %p101 = scmp.eq.s32.totalorder %s13, 0
    %p102 = por %p100, %p101
    %p103 = scmp.ne.s32.totalorder %s89, %s90
    %p104 = scmp.eq.s32.totalorder %s14, 1
    %p105 = por %p103, %p104
    %p107 = scmp.ne.s32.totalorder %s90, %s106
    %p108 = scmp.eq.s32.totalorder %s14, 0
    %p109 = por %p107, %p108
    %p110 = scmp.le.s32.totalorder 1, %s8
    %p111 = scmp.lt.s32.totalorder %s8, 3
    %p112 = pnand %p110, %p111
    %p113 = pneg %p112
    // Predicated region
    $region9: #{tnet_forward.5} parent=5 // pred_check
      _
    $region10: #{tnet_forward.5} parent=5 // pred_check_branch
      %115 = sbr.rel (%p112) target = $region12
    $region11: #{tnet_forward.5} parent=5 // pred_region
      %s116 = ssub.s32 %s8, 1
    $region12: #{tnet_forward.5} parent=5 // pred_fallthru
      _
    %p117 = scmp.lt.s32.totalorder %s8, 2
    // Predicated region
    $region13: #{tnet_forward.5} parent=5 // pred_check
      %p118 = pneg %p117
    $region14: #{tnet_forward.5} parent=5 // pred_check_branch
      %120 = sbr.rel (%p118) target = $region16
    $region15: #{tnet_forward.5} parent=5 // pred_region
      // Predicated region
      $region17: #{tnet_forward.5} parent=15 // pred_check
        %p121 = pneg %p40
      $region18: #{tnet_forward.5} parent=15 // pred_check_branch
        %123 = sbr.rel (%p121) target = $region20
      $region19: #{tnet_forward.5} parent=15 // pred_region
        %p124 = scmp.lt.s32.totalorder %s15, 1
        %s125 = scalar_select %p124, %s15, 1
        %s126 = smul.addr %s125, 4
        %s127 = scalar_lea.vmem %s0, %s126
      $region20: #{tnet_forward.5} parent=15 // pred_fallthru
        _
      // Predicated region
      $region21: #{tnet_forward.5} parent=15 // pred_check
        %p128 = pneg %p68
      $region22: #{tnet_forward.5} parent=15 // pred_check_branch
        %130 = sbr.rel (%p128) target = $region24
      $region23: #{tnet_forward.5} parent=15 // pred_region
        %p131 = scmp.lt.s32.totalorder %s15, 1
        %s132 = scalar_select %p131, %s15, 1
        %p133 = scmp.lt.s32.totalorder %s16, 0
        %s134 = scalar_select %p133, %s16, 0
        %s135 = sadd.s32 %s134, %s132
        %s136 = smul.addr %s135, 4
        %s137 = scalar_lea.vmem %s1, %s136
      $region24: #{tnet_forward.5} parent=15 // pred_fallthru
        _
    $region16: #{tnet_forward.5} parent=5 // pred_fallthru
      _
    %p138 = scmp.le.s32.totalorder 1, %s8
    %p139 = scmp.lt.s32.totalorder %s8, 3
    %p140 = pnand %p138, %p139
    %p141 = pneg %p140
    // Predicated region
    $region25: #{tnet_forward.5} parent=5 // pred_check
      _
    $region26: #{tnet_forward.5} parent=5 // pred_check_branch
      %143 = sbr.rel (%p140) target = $region28
    $region27: #{tnet_forward.5} parent=5 // pred_region
      %s144 = ssub.s32 %s8, 1
      %p145 = scmp.lt.s32.totalorder %s17, 1
      %s146 = scalar_select %p145, %s17, 1
      %s147 = smul.addr %s146, 4
      %s148 = scalar_lea.vmem %s0, %s147
      %p149 = pneg %p46
      %p150 = pneg %p43
      %p151 = scmp.lt.s32.totalorder %s17, 1
      %s152 = scalar_select %p151, %s17, 1
      %p153 = scmp.lt.s32.totalorder %s18, 0
      %s154 = scalar_select %p153, %s18, 0
      %s155 = sadd.s32 %s154, %s152
      %s156 = smul.addr %s155, 4
      %s157 = scalar_lea.vmem %s1, %s156
      %p158 = pneg %p74
      %p159 = pneg %p71
      %p160 = pneg %p102
      %p161 = pneg %p99
      %p162 = scmp.lt.s32.totalorder %s17, 1
      %s163 = scalar_select %p162, %s17, 1
      %p164 = scmp.lt.s32.totalorder %s18, 0
      %s165 = scalar_select %p164, %s18, 0
      %s166 = sadd.s32 %s165, %s163
      %s167 = smul.addr %s166, 4
      %s168 = scalar_lea.vmem %s2, %s167
      %p169 = scmp.lt.s32.totalorder %s17, 1
      %s170 = scalar_select %p169, %s17, 1
      %s171 = smul.addr %s170, 4
      %s172 = scalar_lea.vmem %s0, %s171
      %p173 = scmp.lt.s32.totalorder %s17, 1
      %s174 = scalar_select %p173, %s17, 1
      %p175 = scmp.lt.s32.totalorder %s18, 0
      %s176 = scalar_select %p175, %s18, 0
      %s177 = sadd.s32 %s176, %s174
      %s178 = smul.addr %s177, 4
      %s179 = scalar_lea.vmem %s1, %s178
      %p180 = scmp.lt.s32.totalorder %s17, 1
      %s181 = scalar_select %p180, %s17, 1
      %p182 = scmp.lt.s32.totalorder %s18, 0
      %s183 = scalar_select %p182, %s18, 0
      %s184 = sadd.s32 %s183, %s181
      %s185 = smul.addr %s184, 4
      %s186 = scalar_lea.vmem %s2, %s185
      %v187 = vld [vmem:[%s172] sm:$0x7]
      %v188 = vld [vmem:[%s179] sm:$0x7]
      %190 = vset.pattern.permute.xlu0 0
      %191 = vperm.xlu0 %190, %v187
      %v192 = vpop.permute.xlu0 %191
      %v194 = vlaneseq
      %v195 = vshrl.u32 %v194, 7
      %v196 = vsub.s32 0, %v195
      %v197 = vrot.slane %v188, %v196
      %v198 = vmul.f32 %v192, %v197
      %199 = vset.pattern.permute.xlu0 1
      %200 = vperm.xlu0 %199, %v187
      %v201 = vpop.permute.xlu0 %200
      %v203 = vlaneseq
      %v204 = vshrl.u32 %v203, 7
      %v205 = vsub.s32 1, %v204
      %v206 = vrot.slane %v188, %v205
      %v207 = vmul.f32 %v201, %v206
      %v208 = vadd.f32 %v198, %v207
      %209 = vset.pattern.permute.xlu0 2
      %210 = vperm.xlu0 %209, %v187
      %v211 = vpop.permute.xlu0 %210
      %v213 = vlaneseq
      %v214 = vshrl.u32 %v213, 7
      %v215 = vsub.s32 2, %v214
      %v216 = vrot.slane %v188, %v215
      %v217 = vmul.f32 %v211, %v216
      %v218 = vadd.f32 %v208, %v217
      %219 = vst [vmem:[%s186] sm:$0x7] %v218
      %p220 = scmp.lt.s32.totalorder %s17, 1
      %s221 = scalar_select %p220, %s17, 1
      %p222 = scmp.lt.s32.totalorder %s18, 0
      %s223 = scalar_select %p222, %s18, 0
      %s224 = sadd.s32 %s223, %s221
      %s225 = smul.addr %s224, 4
      %s226 = scalar_lea.vmem %s2, %s225
      // Predicated region
      $region29: #{tnet_forward.5} parent=27 // pred_check
        %p227 = pneg %p99
      $region30: #{tnet_forward.5} parent=27 // pred_check_branch
        %229 = sbr.rel (%p227) target = $region32
      $region31: #{tnet_forward.5} parent=27 // pred_region
        _
      $region32: #{tnet_forward.5} parent=27 // pred_fallthru
        _
    $region28: #{tnet_forward.5} parent=5 // pred_fallthru
      _
    %p230 = scmp.le.s32.totalorder 2, %s8
    // Predicated region
    $region33: #{tnet_forward.5} parent=5 // pred_check
      %p231 = pneg %p230
    $region34: #{tnet_forward.5} parent=5 // pred_check_branch
      %233 = sbr.rel (%p231) target = $region36
    $region35: #{tnet_forward.5} parent=5 // pred_region
      %s234 = ssub.s32 %s8, 2
      // Predicated region
      $region37: #{tnet_forward.5} parent=35 // pred_check
        %p235 = pneg %p105
      $region38: #{tnet_forward.5} parent=35 // pred_check_branch
        %237 = sbr.rel (%p235) target = $region40
      $region39: #{tnet_forward.5} parent=35 // pred_region
        %p238 = scmp.lt.s32.totalorder %s19, 1
        %s239 = scalar_select %p238, %s19, 1
        %p240 = scmp.lt.s32.totalorder %s20, 0
        %s241 = scalar_select %p240, %s20, 0
        %s242 = sadd.s32 %s241, %s239
        %s243 = smul.addr %s242, 4
        %s244 = scalar_lea.vmem %s2, %s243
      $region40: #{tnet_forward.5} parent=35 // pred_fallthru
        _
    $region36: #{tnet_forward.5} parent=5 // pred_fallthru
      _
  $region6: #{tnet_forward.5} parent=0 // loop_footer
    %s12 = sadd.s32 1, %s8
  $region7: #{tnet_forward.5} parent=0 // loop_footer_branch
    %7 = sbr.rel target = $region3
  $region8: #{tnet_forward.5} parent=0 // loop_exit
    _

// kernel: tnet_forward.4
$region0: #{tnet_forward.4}
  #allocation0 [shape = 'u32[]', space=smem, size = 0x4, offset = 0x4, fixed_abs, tag = 'smem constant byte address 0x4 - core index']
  #allocation1 [shape = 'u32[144,128]{1,0:T(1,128)}', space=vmem, size = 0x12000, scoped, tag = 'internal scratch']
  %s0 = inlined_call_operand.vmem [shape: f32[2,1,1,256], index: 0, kind: input, shape index: {}]
  %s1 = inlined_call_operand.vmem [shape: f32[256,128], index: 1, kind: input, shape index: {}]
  %s2 = inlined_call_operand.vmem [shape: f32[1,128], index: 2, kind: input, shape index: {}]
  %s3 = inlined_call_operand.vmem [shape: f32[128,64], index: 3, kind: input, shape index: {}]
  %s4 = inlined_call_operand.vmem [shape: f32[1,64], index: 4, kind: input, shape index: {}]
  %s5 = inlined_call_operand.vmem [shape: f32[64,6], index: 5, kind: input, shape index: {}]
  %s6 = inlined_call_operand.vmem [shape: f32[1,6], index: 6, kind: input, shape index: {}]
  %s7 = inlined_call_operand.vmem [shape: f32[2,9], index: 7, kind: output, shape index: {}]
  %s8 = sld [smem:[#allocation0]]
  $region38: #{tnet_forward.4} parent=0
    _
  %s10 = ssub.s32 1, %s8
  %s11 = scalar_select 0, %s10, %s8
  // Predicated region
  $region2: #{tnet_forward.4} parent=0 // pred_check
    _
  $region3: #{tnet_forward.4} parent=0 // pred_check_branch
    %13 = sbr.rel (0) target = $region5
  $region4: #{tnet_forward.4} parent=0 // pred_region
    _
  $region5: #{tnet_forward.4} parent=0 // pred_fallthru
    _
  // Predicated region
  $region6: #{tnet_forward.4} parent=0 // pred_check
    _
  $region7: #{tnet_forward.4} parent=0 // pred_check_branch
    %15 = sbr.rel (0) target = $region9
  $region8: #{tnet_forward.4} parent=0 // pred_region
    _
  $region9: #{tnet_forward.4} parent=0 // pred_fallthru
    _
  // Predicated region
  $region10: #{tnet_forward.4} parent=0 // pred_check
    _
  $region11: #{tnet_forward.4} parent=0 // pred_check_branch
    %17 = sbr.rel (0) target = $region13
  $region12: #{tnet_forward.4} parent=0 // pred_region
    _
  $region13: #{tnet_forward.4} parent=0 // pred_fallthru
    _
  // Predicated region
  $region14: #{tnet_forward.4} parent=0 // pred_check
    _
  $region15: #{tnet_forward.4} parent=0 // pred_check_branch
    %19 = sbr.rel (0) target = $region17
  $region16: #{tnet_forward.4} parent=0 // pred_region
    _
  $region17: #{tnet_forward.4} parent=0 // pred_fallthru
    _
  // Predicated region
  $region18: #{tnet_forward.4} parent=0 // pred_check
    _
  $region19: #{tnet_forward.4} parent=0 // pred_check_branch
    %21 = sbr.rel (0) target = $region21
  $region20: #{tnet_forward.4} parent=0 // pred_region
    _
  $region21: #{tnet_forward.4} parent=0 // pred_fallthru
    _
  // Predicated region
  $region22: #{tnet_forward.4} parent=0 // pred_check
    _
  $region23: #{tnet_forward.4} parent=0 // pred_check_branch
    %23 = sbr.rel (0) target = $region25
  $region24: #{tnet_forward.4} parent=0 // pred_region
    _
  $region25: #{tnet_forward.4} parent=0 // pred_fallthru
    _
  // Predicated region
  $region26: #{tnet_forward.4} parent=0 // pred_check
    _
  $region27: #{tnet_forward.4} parent=0 // pred_check_branch
    %25 = sbr.rel (0) target = $region29
  $region28: #{tnet_forward.4} parent=0 // pred_region
    _
  $region29: #{tnet_forward.4} parent=0 // pred_fallthru
    _
  %v26 = vld [vmem:[%s0] sm:$0x3]
  %v27 = vld [vmem:[%s0 + $0x2] sm:$0x3]
  %v28 = vld [vmem:[%s1] sm:$0xff]
  %v29 = vld [vmem:[%s1 + $0x8] sm:$0xff]
  %v30 = vld [vmem:[%s1 + $0x10] sm:$0xff]
  %v31 = vld [vmem:[%s1 + $0x18] sm:$0xff]
  %v32 = vld [vmem:[%s1 + $0x20] sm:$0xff]
  %v33 = vld [vmem:[%s1 + $0x28] sm:$0xff]
  %v34 = vld [vmem:[%s1 + $0x30] sm:$0xff]
  %v35 = vld [vmem:[%s1 + $0x38] sm:$0xff]
  %v36 = vld [vmem:[%s1 + $0x40] sm:$0xff]
  %v37 = vld [vmem:[%s1 + $0x48] sm:$0xff]
  %v38 = vld [vmem:[%s1 + $0x50] sm:$0xff]
  %v39 = vld [vmem:[%s1 + $0x58] sm:$0xff]
  %v40 = vld [vmem:[%s1 + $0x60] sm:$0xff]
  %v41 = vld [vmem:[%s1 + $0x68] sm:$0xff]
  %v42 = vld [vmem:[%s1 + $0x70] sm:$0xff]
  %v43 = vld [vmem:[%s1 + $0x78] sm:$0xff]
  %v44 = vld [vmem:[%s1 + $0x80] sm:$0xff]
  %v45 = vld [vmem:[%s1 + $0x88] sm:$0xff]
  %v46 = vld [vmem:[%s1 + $0x90] sm:$0xff]
  %v47 = vld [vmem:[%s1 + $0x98] sm:$0xff]
  %v48 = vld [vmem:[%s1 + $0xa0] sm:$0xff]
  %v49 = vld [vmem:[%s1 + $0xa8] sm:$0xff]
  %v50 = vld [vmem:[%s1 + $0xb0] sm:$0xff]
  %v51 = vld [vmem:[%s1 + $0xb8] sm:$0xff]
  %v52 = vld [vmem:[%s1 + $0xc0] sm:$0xff]
  %v53 = vld [vmem:[%s1 + $0xc8] sm:$0xff]
  %v54 = vld [vmem:[%s1 + $0xd0] sm:$0xff]
  %v55 = vld [vmem:[%s1 + $0xd8] sm:$0xff]
  %v56 = vld [vmem:[%s1 + $0xe0] sm:$0xff]
  %v57 = vld [vmem:[%s1 + $0xe8] sm:$0xff]
  %v58 = vld [vmem:[%s1 + $0xf0] sm:$0xff]
  %v59 = vld [vmem:[%s1 + $0xf8] sm:$0xff]
  %v60 = vld [vmem:[%s2] sm:$0x1]
  %v62 = vlaneseq
  %v63 = vshrl.u32 %v62, 7
  %v64 = vsub.s32 0, %v63
  %v65 = vrot.slane %v60, %v64
  %v69 = vcombine.low %v26, %v27
  %v71 = vunpack.c.l.s4 1966171168
  %v72 = vunpack.c.0.s8 %v71
  %v73 = vlaneseq
  %v74 = vshrl.u32 %v73, 7
  %v75 = vsub.s32 %v72, %v74
  %v76 = vrot.slane %v69, %v75
  %v77 = vcombine.high %v76, %v76
  %v79 = vunpack.c.l.s4 1966171168
  %v80 = vunpack.c.0.s8 %v79
  %v81 = vlaneseq
  %v82 = vshrl.u32 %v81, 7
  %v83 = vsub.s32 %v80, %v82
  %v84 = vrot.slane %v76, %v83
  %v86 = vunpack.c.l.s4 1966171168
  %v87 = vunpack.c.0.s8 %v86
  %v88 = vlaneseq
  %v89 = vshrl.u32 %v88, 7
  %v90 = vsub.s32 %v87, %v89
  %v91 = vrot.slane %v77, %v90
  %94 = vmatprep.subr.mxu0 0.0
  %95 = vmatpush1.msra.mxu0 %v43
  %96 = vmatprep.subr.mxu0 0.0
  %97 = vmatpush1.msra.mxu0 %v42
  %98 = vmatprep.subr.mxu0 0.0
  %99 = vmatpush1.msra.mxu0 %v41
  %100 = vmatprep.subr.mxu0 0.0
  %101 = vmatpush1.msra.mxu0 %v40
  %102 = vmatprep.subr.mxu0 0.0
  %103 = vmatpush1.msra.mxu0 %v39
  %104 = vmatprep.subr.mxu0 0.0
  %105 = vmatpush1.msra.mxu0 %v38
  %106 = vmatprep.subr.mxu0 0.0
  %107 = vmatpush1.msra.mxu0 %v37
  %108 = vmatprep.subr.mxu0 0.0
  %109 = vmatpush1.msra.mxu0 %v36
  %110 = vmatprep.subr.mxu0 0.0
  %111 = vmatpush1.msra.mxu0 %v35
  %112 = vmatprep.subr.mxu0 0.0
  %113 = vmatpush1.msra.mxu0 %v34
  %114 = vmatprep.subr.mxu0 0.0
  %115 = vmatpush1.msra.mxu0 %v33
  %116 = vmatprep.subr.mxu0 0.0
  %117 = vmatpush1.msra.mxu0 %v32
  %118 = vmatprep.subr.mxu0 0.0
  %119 = vmatpush1.msra.mxu0 %v31
  %120 = vmatprep.subr.mxu0 0.0
  %121 = vmatpush1.msra.mxu0 %v30
  %122 = vmatprep.subr.mxu0 0.0
  %123 = vmatpush1.msra.mxu0 %v29
  %124 = vmatprep.subr.mxu0 0.0
  %125 = vmatpush1.msra.mxu0 %v28
  %126 = vmatprep.subr.mxu0 0.0
  %127 = vmatpush2.msra.mxu0 %v59
  %128 = vmatprep.subr.mxu0 0.0
  %129 = vmatpush2.msra.mxu0 %v58
  %130 = vmatprep.subr.mxu0 0.0
  %131 = vmatpush2.msra.mxu0 %v57
  %132 = vmatprep.subr.mxu0 0.0
  %133 = vmatpush2.msra.mxu0 %v56
  %134 = vmatprep.subr.mxu0 0.0
  %135 = vmatpush2.msra.mxu0 %v55
  %136 = vmatprep.subr.mxu0 0.0
  %137 = vmatpush2.msra.mxu0 %v54
  %138 = vmatprep.subr.mxu0 0.0
  %139 = vmatpush2.msra.mxu0 %v53
  %140 = vmatprep.subr.mxu0 0.0
  %141 = vmatpush2.msra.mxu0 %v52
  %142 = vmatprep.subr.mxu0 0.0
  %143 = vmatpush2.msra.mxu0 %v51
  %144 = vmatprep.subr.mxu0 0.0
  %145 = vmatpush2.msra.mxu0 %v50
  %146 = vmatprep.subr.mxu0 0.0
  %147 = vmatpush2.msra.mxu0 %v49
  %148 = vmatprep.subr.mxu0 0.0
  %149 = vmatpush2.msra.mxu0 %v48
  %150 = vmatprep.subr.mxu0 0.0
  %151 = vmatpush2.msra.mxu0 %v47
  %152 = vmatprep.subr.mxu0 0.0
  %153 = vmatpush2.msra.mxu0 %v46
  %154 = vmatprep.subr.mxu0 0.0
  %155 = vmatpush2.msra.mxu0 %v45
  %156 = vmatprep.subr.mxu0 0.0
  %157 = vmatpush2.msra.mxu0 %v44
  %158 = vmatprep.mubr.f32.mxu0 %v91
  %159 = vmatmul.mubr.f32.gmra.mxu0 %v84
  %v160 = vpop.f32.mrf.mxu0
  %v161 = vadd.f32 %v65, %v160
  %v162 = vpop.f32.mrf.mxu0
  %163 = vdwg.mxu0
  %v164 = vmax.f32 %v161, 0.0
  %v165 = vld [vmem:[%s3] sm:$0xff]
  %v166 = vld [vmem:[%s3 + $0x8] sm:$0xff]
  %v167 = vld [vmem:[%s3 + $0x10] sm:$0xff]
  %v168 = vld [vmem:[%s3 + $0x18] sm:$0xff]
  %v169 = vld [vmem:[%s3 + $0x20] sm:$0xff]
  %v170 = vld [vmem:[%s3 + $0x28] sm:$0xff]
  %v171 = vld [vmem:[%s3 + $0x30] sm:$0xff]
  %v172 = vld [vmem:[%s3 + $0x38] sm:$0xff]
  %v173 = vld [vmem:[%s3 + $0x40] sm:$0xff]
  %v174 = vld [vmem:[%s3 + $0x48] sm:$0xff]
  %v175 = vld [vmem:[%s3 + $0x50] sm:$0xff]
  %v176 = vld [vmem:[%s3 + $0x58] sm:$0xff]
  %v177 = vld [vmem:[%s3 + $0x60] sm:$0xff]
  %v178 = vld [vmem:[%s3 + $0x68] sm:$0xff]
  %v179 = vld [vmem:[%s3 + $0x70] sm:$0xff]
  %v180 = vld [vmem:[%s3 + $0x78] sm:$0xff]
  %v181 = vld [vmem:[%s4] sm:$0x1]
  %v183 = vlaneseq
  %v184 = vshrl.u32 %v183, 7
  %v185 = vsub.s32 0, %v184
  %v186 = vrot.slane %v181, %v185
  %188 = vmatprep.subr.mxu0 0.0
  %189 = vmatpush1.msra.mxu0 %v180
  %190 = vmatprep.subr.mxu0 0.0
  %191 = vmatpush1.msra.mxu0 %v179
  %192 = vmatprep.subr.mxu0 0.0
  %193 = vmatpush1.msra.mxu0 %v178
  %194 = vmatprep.subr.mxu0 0.0
  %195 = vmatpush1.msra.mxu0 %v177
  %196 = vmatprep.subr.mxu0 0.0
  %197 = vmatpush1.msra.mxu0 %v176
  %198 = vmatprep.subr.mxu0 0.0
  %199 = vmatpush1.msra.mxu0 %v175
  %200 = vmatprep.subr.mxu0 0.0
  %201 = vmatpush1.msra.mxu0 %v174
  %202 = vmatprep.subr.mxu0 0.0
  %203 = vmatpush1.msra.mxu0 %v173
  %204 = vmatprep.subr.mxu0 0.0
  %205 = vmatpush1.msra.mxu0 %v172
  %206 = vmatprep.subr.mxu0 0.0
  %207 = vmatpush1.msra.mxu0 %v171
  %208 = vmatprep.subr.mxu0 0.0
  %209 = vmatpush1.msra.mxu0 %v170
  %210 = vmatprep.subr.mxu0 0.0
  %211 = vmatpush1.msra.mxu0 %v169
  %212 = vmatprep.subr.mxu0 0.0
  %213 = vmatpush1.msra.mxu0 %v168
  %214 = vmatprep.subr.mxu0 0.0
  %215 = vmatpush1.msra.mxu0 %v167
  %216 = vmatprep.subr.mxu0 0.0
  %217 = vmatpush1.msra.mxu0 %v166
  %218 = vmatprep.subr.mxu0 0.0
  %219 = vmatpush1.msra.mxu0 %v165
  %220 = vmatprep.subr.mxu0 0.0
  %221 = vmatpush2.msra.mxu0 0.0
  %222 = vmatprep.subr.mxu0 0.0
  %223 = vmatpush2.msra.mxu0 0.0
  %224 = vmatprep.subr.mxu0 0.0
  %225 = vmatpush2.msra.mxu0 0.0
  %226 = vmatprep.subr.mxu0 0.0
  %227 = vmatpush2.msra.mxu0 0.0
  %228 = vmatprep.subr.mxu0 0.0
  %229 = vmatpush2.msra.mxu0 0.0
  %230 = vmatprep.subr.mxu0 0.0
  %231 = vmatpush2.msra.mxu0 0.0
  %232 = vmatprep.subr.mxu0 0.0
  %233 = vmatpush2.msra.mxu0 0.0
  %234 = vmatprep.subr.mxu0 0.0
  %235 = vmatpush2.msra.mxu0 0.0
  %236 = vmatprep.subr.mxu0 0.0
  %237 = vmatpush2.msra.mxu0 0.0
  %238 = vmatprep.subr.mxu0 0.0
  %239 = vmatpush2.msra.mxu0 0.0
  %240 = vmatprep.subr.mxu0 0.0
  %241 = vmatpush2.msra.mxu0 0.0
  %242 = vmatprep.subr.mxu0 0.0
  %243 = vmatpush2.msra.mxu0 0.0
  %244 = vmatprep.subr.mxu0 0.0
  %245 = vmatpush2.msra.mxu0 0.0
  %246 = vmatprep.subr.mxu0 0.0
  %247 = vmatpush2.msra.mxu0 0.0
  %248 = vmatprep.subr.mxu0 0.0
  %249 = vmatpush2.msra.mxu0 0.0
  %250 = vmatprep.subr.mxu0 0.0
  %251 = vmatpush2.msra.mxu0 0.0
  %252 = vmatprep.mubr.f32.mxu0 0.0
  %253 = vmatmul.mubr.f32.gmra.mxu0 %v164
  %v254 = vpop.f32.mrf.mxu0
  %v255 = vadd.f32 %v186, %v254
  %v256 = vpop.f32.mrf.mxu0
  %257 = vdwg.mxu0
  %v258 = vmax.f32 %v255, 0.0
  %v259 = vld [vmem:[%s5] sm:$0xff]
  %v260 = vld [vmem:[%s5 + $0x8] sm:$0xff]
  %v261 = vld [vmem:[%s5 + $0x10] sm:$0xff]
  %v262 = vld [vmem:[%s5 + $0x18] sm:$0xff]
  %v263 = vld [vmem:[%s5 + $0x20] sm:$0xff]
  %v264 = vld [vmem:[%s5 + $0x28] sm:$0xff]
  %v265 = vld [vmem:[%s5 + $0x30] sm:$0xff]
  %v266 = vld [vmem:[%s5 + $0x38] sm:$0xff]
  %v267 = vld [vmem:[%s6] sm:$0x1]
  %v269 = vlaneseq
  %v270 = vshrl.u32 %v269, 7
  %v271 = vsub.s32 0, %v270
  %v272 = vrot.slane %v267, %v271
  %vm274 = vcmask 523264
  %v276 = vsel %vm274, %v258, 0
  %278 = vmatprep.subr.mxu0 0.0
  %279 = vmatpush1.msra.mxu0 0.0
  %280 = vmatprep.subr.mxu0 0.0
  %281 = vmatpush1.msra.mxu0 0.0
  %282 = vmatprep.subr.mxu0 0.0
  %283 = vmatpush1.msra.mxu0 0.0
  %284 = vmatprep.subr.mxu0 0.0
  %285 = vmatpush1.msra.mxu0 0.0
  %286 = vmatprep.subr.mxu0 0.0
  %287 = vmatpush1.msra.mxu0 0.0
  %288 = vmatprep.subr.mxu0 0.0
  %289 = vmatpush1.msra.mxu0 0.0
  %290 = vmatprep.subr.mxu0 0.0
  %291 = vmatpush1.msra.mxu0 0.0
  %292 = vmatprep.subr.mxu0 0.0
  %293 = vmatpush1.msra.mxu0 0.0
  %294 = vmatprep.subr.mxu0 0.0
  %295 = vmatpush1.msra.mxu0 %v266
  %296 = vmatprep.subr.mxu0 0.0
  %297 = vmatpush1.msra.mxu0 %v265
  %298 = vmatprep.subr.mxu0 0.0
  %299 = vmatpush1.msra.mxu0 %v264
  %300 = vmatprep.subr.mxu0 0.0
  %301 = vmatpush1.msra.mxu0 %v263
  %302 = vmatprep.subr.mxu0 0.0
  %303 = vmatpush1.msra.mxu0 %v262
  %304 = vmatprep.subr.mxu0 0.0
  %305 = vmatpush1.msra.mxu0 %v261
  %306 = vmatprep.subr.mxu0 0.0
  %307 = vmatpush1.msra.mxu0 %v260
  %308 = vmatprep.subr.mxu0 0.0
  %309 = vmatpush1.msra.mxu0 %v259
  %310 = vmatprep.subr.mxu0 0.0
  %311 = vmatpush2.msra.mxu0 0.0
  %312 = vmatprep.subr.mxu0 0.0
  %313 = vmatpush2.msra.mxu0 0.0
  %314 = vmatprep.subr.mxu0 0.0
  %315 = vmatpush2.msra.mxu0 0.0
  %316 = vmatprep.subr.mxu0 0.0
  %317 = vmatpush2.msra.mxu0 0.0
  %318 = vmatprep.subr.mxu0 0.0
  %319 = vmatpush2.msra.mxu0 0.0
  %320 = vmatprep.subr.mxu0 0.0
  %321 = vmatpush2.msra.mxu0 0.0
  %322 = vmatprep.subr.mxu0 0.0
  %323 = vmatpush2.msra.mxu0 0.0
  %324 = vmatprep.subr.mxu0 0.0
  %325 = vmatpush2.msra.mxu0 0.0
  %326 = vmatprep.subr.mxu0 0.0
  %327 = vmatpush2.msra.mxu0 0.0
  %328 = vmatprep.subr.mxu0 0.0
  %329 = vmatpush2.msra.mxu0 0.0
  %330 = vmatprep.subr.mxu0 0.0
  %331 = vmatpush2.msra.mxu0 0.0
  %332 = vmatprep.subr.mxu0 0.0
  %333 = vmatpush2.msra.mxu0 0.0
  %334 = vmatprep.subr.mxu0 0.0
  %335 = vmatpush2.msra.mxu0 0.0
  %336 = vmatprep.subr.mxu0 0.0
  %337 = vmatpush2.msra.mxu0 0.0
  %338 = vmatprep.subr.mxu0 0.0
  %339 = vmatpush2.msra.mxu0 0.0
  %340 = vmatprep.subr.mxu0 0.0
  %341 = vmatpush2.msra.mxu0 0.0
  %342 = vmatprep.mubr.f32.mxu0 0.0
  %343 = vmatmul.mubr.f32.gmra.mxu0 %v276
  %v344 = vpop.f32.mrf.mxu0
  %v345 = vadd.f32 %v272, %v344
  %v346 = vpop.f32.mrf.mxu0
  %347 = vdwg.mxu0
  %v348 = vmul.f32 %v345, %v345
  %350 = vrot.lane.b32.xlu0 %v348, 127
  %v351 = vpop.permute.xlu0 %350
  %v353 = vadd.f32 %v348, %v351
  %354 = vrot.lane.b32.xlu0 %v348, 126
  %v355 = vpop.permute.xlu0 %354
  %v357 = vadd.f32 %v353, %v355
  %v358 = vrsqrt.pop %v357
  %v359 = vmul.f32 %v357, %v358
  %vm360 = vcmp.eq.f32.partialorder %v357, inf
  %v361 = vsel %vm360, %v357, %v359
  %vm362 = vcmp.eq.f32.partialorder %v357, 0.0
  %v363 = vand.u32 %v357, 2147483648
  %v364 = vsel %vm362, %v363, %v361
  %v365 = vmax.f32 %v364, 1e-12
  %v366 = vrcp.pop %v365
  %v367 = vmul.f32 %v345, %v366
  %369 = vrot.lane.b32.xlu0 %v365, 1
  %v370 = vpop.permute.xlu0 %369
  %v372 = vrcp.pop %v370
  %v373 = vmul.f32 %v345, %v372
  %374 = vrot.lane.b32.xlu0 %v365, 2
  %v375 = vpop.permute.xlu0 %374
  %v377 = vrcp.pop %v375
  %v378 = vmul.f32 %v345, %v377
  %380 = vrot.lane.b32.xlu0 %v345, 125
  %v381 = vpop.permute.xlu0 %380
  %v383 = vmul.f32 %v367, %v381
  %v384 = vmul.f32 %v373, %v381
  %386 = vrot.lane.b32.xlu0 %v384, 127
  %v387 = vpop.permute.xlu0 %386
  %v389 = vadd.f32 %v383, %v387
  %v390 = vmul.f32 %v378, %v381
  %392 = vrot.lane.b32.xlu0 %v390, 126
  %v393 = vpop.permute.xlu0 %392
  %v395 = vadd.f32 %v389, %v393
  %v396 = vmul.f32 %v395, %v367
  %398 = vrot.lane.b32.xlu0 %v396, 3
  %v399 = vpop.permute.xlu0 %398
  %v401 = vsub.f32 %v345, %v399
  %403 = vrot.lane.b32.xlu0 %v373, 127
  %v404 = vpop.permute.xlu0 %403
  %v406 = vmul.f32 %v395, %v404
  %408 = vrot.lane.b32.xlu0 %v406, 4
  %v409 = vpop.permute.xlu0 %408
  %v411 = vsub.f32 %v345, %v409
  %413 = vrot.lane.b32.xlu0 %v378, 126
  %v414 = vpop.permute.xlu0 %413
  %v416 = vmul.f32 %v395, %v414
  %418 = vrot.lane.b32.xlu0 %v416, 5
  %v419 = vpop.permute.xlu0 %418
  %v421 = vsub.f32 %v345, %v419
  %v422 = vmul.f32 %v401, %v401
  %v423 = vmul.f32 %v411, %v411
  %425 = vrot.lane.b32.xlu0 %v423, 127
  %v426 = vpop.permute.xlu0 %425
  %v428 = vadd.f32 %v422, %v426
  %v429 = vmul.f32 %v421, %v421
  %431 = vrot.lane.b32.xlu0 %v429, 126
  %v432 = vpop.permute.xlu0 %431
  %v434 = vadd.f32 %v428, %v432
  %v435 = vrsqrt.pop %v434
  %v436 = vmul.f32 %v434, %v435
  %vm437 = vcmp.eq.f32.partialorder %v434, inf
  %v438 = vsel %vm437, %v434, %v436
  %vm439 = vcmp.eq.f32.partialorder %v434, 0.0
  %v440 = vand.u32 %v434, 2147483648
  %v441 = vsel %vm439, %v440, %v438
  %v442 = vmax.f32 %v441, 1e-12
  %v443 = vrcp.pop %v442
  %v444 = vmul.f32 %v401, %v443
  %446 = vrot.lane.b32.xlu0 %v442, 1
  %v447 = vpop.permute.xlu0 %446
  %v449 = vrcp.pop %v447
  %v450 = vmul.f32 %v411, %v449
  %451 = vrot.lane.b32.xlu0 %v442, 2
  %v452 = vpop.permute.xlu0 %451
  %v454 = vrcp.pop %v452
  %v455 = vmul.f32 %v421, %v454
  %457 = vrot.lane.b32.xlu0 %v455, 124
  %v458 = vpop.permute.xlu0 %457
  %v460 = vmul.f32 %v373, %v458
  %462 = vrot.lane.b32.xlu0 %v450, 126
  %v463 = vpop.permute.xlu0 %462
  %v465 = vmul.f32 %v378, %v463
  %467 = vrot.lane.b32.xlu0 %v465, 127
  %v468 = vpop.permute.xlu0 %467
  %v470 = vsub.f32 %v460, %v468
  %472 = vrot.lane.b32.xlu0 %v444, 127
  %v473 = vpop.permute.xlu0 %472
  %v475 = vmul.f32 %v378, %v473
  %476 = vrot.lane.b32.xlu0 %v455, 123
  %v477 = vpop.permute.xlu0 %476
  %v479 = vmul.f32 %v367, %v477
  %481 = vrot.lane.b32.xlu0 %v479, 2
  %v482 = vpop.permute.xlu0 %481
  %v484 = vsub.f32 %v475, %v482
  %485 = vrot.lane.b32.xlu0 %v450, 124
  %v486 = vpop.permute.xlu0 %485
  %v488 = vmul.f32 %v367, %v486
  %489 = vrot.lane.b32.xlu0 %v444, 126
  %v490 = vpop.permute.xlu0 %489
  %v492 = vmul.f32 %v373, %v490
  %494 = vrot.lane.b32.xlu0 %v492, 127
  %v495 = vpop.permute.xlu0 %494
  %v497 = vsub.f32 %v488, %v495
  %vm498 = vcmask 1024
  %499 = vst.msk [vmem:[%s7] sm:$0x3] %vm498, %v367
  %vm500 = vcmask 9224
  %501 = vst.msk [vmem:[%s7] sm:$0x3] %vm500, %v490
  %503 = vrot.lane.b32.xlu0 %v470, 1
  %v504 = vpop.permute.xlu0 %503
  %vm506 = vcmask 17424
  %507 = vst.msk [vmem:[%s7] sm:$0x3] %vm506, %v504
  %508 = vrot.lane.b32.xlu0 %v373, 2
  %v509 = vpop.permute.xlu0 %508
  %vm511 = vcmask 25624
  %512 = vst.msk [vmem:[%s7] sm:$0x3] %vm511, %v509
  %vm513 = vcmask 33824
  %514 = vst.msk [vmem:[%s7] sm:$0x3] %vm513, %v450
  %516 = vrot.lane.b32.xlu0 %v484, 3
  %v517 = vpop.permute.xlu0 %516
  %vm519 = vcmask 42024
  %520 = vst.msk [vmem:[%s7] sm:$0x3] %vm519, %v517
  %521 = vrot.lane.b32.xlu0 %v378, 4
  %v522 = vpop.permute.xlu0 %521
  %vm524 = vcmask 50224
  %525 = vst.msk [vmem:[%s7] sm:$0x3] %vm524, %v522
  %526 = vrot.lane.b32.xlu0 %v455, 2
  %v527 = vpop.permute.xlu0 %526
  %vm529 = vcmask 58424
  %530 = vst.msk [vmem:[%s7] sm:$0x3] %vm529, %v527
  %532 = vrot.lane.b32.xlu0 %v497, 8
  %v533 = vpop.permute.xlu0 %532
  %vm535 = vcmask 66624
  %536 = vst.msk [vmem:[%s7] sm:$0x3] %vm535, %v533
  // Predicated region
  $region30: #{tnet_forward.4} parent=0 // pred_check
    _
  $region31: #{tnet_forward.4} parent=0 // pred_check_branch
    %538 = sbr.rel (0) target = $region33
  $region32: #{tnet_forward.4} parent=0 // pred_region
    _
  $region33: #{tnet_forward.4} parent=0 // pred_fallthru
    _
  // Predicated region
  $region34: #{tnet_forward.4} parent=0 // pred_check
    _
  $region35: #{tnet_forward.4} parent=0 // pred_check_branch
    %540 = sbr.rel (0) target = $region37
  $region36: #{tnet_forward.4} parent=0 // pred_region
    _
  $region37: #{tnet_forward.4} parent=0 // pred_fallthru
    _

// kernel: tnet_forward.3
$region0: #{tnet_forward.3}
  #allocation0 [shape = 'u32[]', space=smem, size = 0x4, offset = 0x4, fixed_abs, tag = 'smem constant byte address 0x4 - core index']
  #allocation1 [shape = 'u32[144,128]{1,0:T(1,128)}', space=vmem, size = 0x12000, scoped, tag = 'internal scratch']
  %s0 = inlined_call_operand.vmem [shape: f32[2,3,128], index: 0, kind: input, shape index: {}]
  %s1 = inlined_call_operand.vmem [shape: f32[64,3], index: 1, kind: input, shape index: {}]
  %s2 = inlined_call_operand.vmem [shape: f32[64,1], index: 2, kind: input, shape index: {}]
  %s3 = inlined_call_operand.vmem [shape: bf16[64,128], index: 3, kind: input, shape index: {}]
  %s4 = inlined_call_operand.vmem [shape: f32[1,128], index: 4, kind: input, shape index: {}]
  %s5 = inlined_call_operand.vmem [shape: bf16[128,256], index: 5, kind: input, shape index: {}]
  %s6 = inlined_call_operand.vmem [shape: f32[1,256], index: 6, kind: input, shape index: {}]
  %s7 = inlined_call_operand.vmem [shape: f32[2,1,1,256], index: 7, kind: output, shape index: {}]
  %s8 = sld [smem:[#allocation0]]
  $region69: #{tnet_forward.3} parent=0
    _
  %s10 = ssub.s32 1, %s8
  %s11 = scalar_select 0, %s10, %s8
  loop: start=0, step=1, limit=4
  $region2: #{tnet_forward.3} parent=0 // loop_pre_header
    _
  $region3: #{tnet_forward.3} parent=0 // loop_header
    %s13 = sphi 0, %s17
    %p14 = scmp.ge.s32.totalorder %s13, 4
    %s20 = sphi 0, %s39
    %s21 = sphi 0, %s35
    %s22 = sphi 0, %s31
    %s23 = sphi 0, %s20
    %s24 = sphi 0, %s21
    %s25 = sphi 0, %s22
    %s26 = sphi 0, %s23
    %s27 = sphi 0, %s24
    %s28 = sphi 0, %s25
    %s46 = sphi 0, %s48
    %s49 = sphi 0, %s46
    %s50 = sphi 0, %s49
    %s66 = sphi 0, %s50
    %s70 = sphi 0, %s70
    %s72 = sphi 0, %s70
    %s73 = sphi 0, %s72
    %s87 = sphi 0, %s73
    %s91 = sphi 0, %s91
    %s93 = sphi 0, %s91
    %s94 = sphi 0, %s93
    %s108 = sphi 0, %s94
    %s112 = sphi 0, %s112
    %s114 = sphi 0, %s112
    %s115 = sphi 0, %s114
    %s129 = sphi 0, %s115
    %s133 = sphi 0, %s133
    %s135 = sphi 0, %s133
    %s136 = sphi 0, %s135
    %s150 = sphi 0, %s136
    %s154 = sphi 0, %s154
    %s156 = sphi 0, %s154
    %s157 = sphi 0, %s156
    %s171 = sphi 0, %s157
    %s175 = sphi 0, %s175
    %s177 = sphi 0, %s175
    %s178 = sphi 0, %s177
    %s192 = sphi 0, %s178
    %s200 = sphi 0, %s202
    %s203 = sphi 0, %s200
    %s204 = sphi 0, %s203
    %s220 = sphi 0, %s204
  $region4: #{tnet_forward.3} parent=0 // loop_header_branch
    %16 = sbr.rel (%p14) target = $region8
  $region5: #{tnet_forward.3} parent=0 // loop_body
    %s18 = ssub.s32 %s13, 1
    %s19 = ssub.s32 %s13, 2
    %s29 = sadd.s32 1, %s22
    %p30 = scmp.ge.s32.totalorder %s29, 1
    %s31 = scalar_select %p30, 0, %s29
    %s32 = sadd.s32 1, %s21
    %s33 = scalar_select %p30, %s32, %s21
    %p34 = scmp.ge.s32.totalorder %s33, 1
    %s35 = scalar_select %p34, 0, %s33
    %s36 = sadd.s32 1, %s20
    %s37 = scalar_select %p34, %s36, %s20
    %p38 = scmp.ge.s32.totalorder %s37, 2
    %s39 = scalar_select %p38, 0, %s37
    %s40 = sadd.s32 %s21, %s22
    %s41 = sadd.s32 %s35, %s31
    %s42 = ssub.s32 %s20, %s39
    %s43 = ssub.s32 %s40, %s41
    %s44 = sor.u32 %s42, %s43
    %p45 = scmp.eq.s32.totalorder %s44, 0
    %s47 = sadd.s32 %s46, 1
    %s48 = scalar_select %p45, %s46, %s47
    %p51 = pneg %p45
    %p52 = scmp.eq.s32.totalorder %s13, 1
    %p53 = por %p51, %p52
    %p54 = scmp.ne.s32.totalorder %s46, %s49
    %p55 = scmp.eq.s32.totalorder %s13, 0
    %p56 = por %p54, %p55
    %p57 = scmp.ne.s32.totalorder %s46, %s49
    %p58 = scmp.eq.s32.totalorder %s18, 1
    %p59 = por %p57, %p58
    %p60 = scmp.ne.s32.totalorder %s49, %s50
    %p61 = scmp.eq.s32.totalorder %s18, 0
    %p62 = por %p60, %p61
    %p63 = scmp.ne.s32.totalorder %s49, %s50
    %p64 = scmp.eq.s32.totalorder %s19, 1
    %p65 = por %p63, %p64
    %p67 = scmp.ne.s32.totalorder %s50, %s66
    %p68 = scmp.eq.s32.totalorder %s19, 0
    %p69 = por %p67, %p68
    %s71 = sadd.s32 %s70, 1
    %p74 = scmp.eq.s32.totalorder %s13, 1
    %p75 = scmp.ne.s32.totalorder %s70, %s72
    %p76 = scmp.eq.s32.totalorder %s13, 0
    %p77 = por %p75, %p76
    %p78 = scmp.ne.s32.totalorder %s70, %s72
    %p79 = scmp.eq.s32.totalorder %s18, 1
    %p80 = por %p78, %p79
    %p81 = scmp.ne.s32.totalorder %s72, %s73
    %p82 = scmp.eq.s32.totalorder %s18, 0
    %p83 = por %p81, %p82
    %p84 = scmp.ne.s32.totalorder %s72, %s73
    %p85 = scmp.eq.s32.totalorder %s19, 1
    %p86 = por %p84, %p85
    %p88 = scmp.ne.s32.totalorder %s73, %s87
    %p89 = scmp.eq.s32.totalorder %s19, 0
    %p90 = por %p88, %p89
    %s92 = sadd.s32 %s91, 1
    %p95 = scmp.eq.s32.totalorder %s13, 1
    %p96 = scmp.ne.s32.totalorder %s91, %s93
    %p97 = scmp.eq.s32.totalorder %s13, 0
    %p98 = por %p96, %p97
    %p99 = scmp.ne.s32.totalorder %s91, %s93
    %p100 = scmp.eq.s32.totalorder %s18, 1
    %p101 = por %p99, %p100
    %p102 = scmp.ne.s32.totalorder %s93, %s94
    %p103 = scmp.eq.s32.totalorder %s18, 0
    %p104 = por %p102, %p103
    %p105 = scmp.ne.s32.totalorder %s93, %s94
    %p106 = scmp.eq.s32.totalorder %s19, 1
    %p107 = por %p105, %p106
    %p109 = scmp.ne.s32.totalorder %s94, %s108
    %p110 = scmp.eq.s32.totalorder %s19, 0
    %p111 = por %p109, %p110
    %s113 = sadd.s32 %s112, 1
    %p116 = scmp.eq.s32.totalorder %s13, 1
    %p117 = scmp.ne.s32.totalorder %s112, %s114
    %p118 = scmp.eq.s32.totalorder %s13, 0
    %p119 = por %p117, %p118
    %p120 = scmp.ne.s32.totalorder %s112, %s114
    %p121 = scmp.eq.s32.totalorder %s18, 1
    %p122 = por %p120, %p121
    %p123 = scmp.ne.s32.totalorder %s114, %s115
    %p124 = scmp.eq.s32.totalorder %s18, 0
    %p125 = por %p123, %p124
    %p126 = scmp.ne.s32.totalorder %s114, %s115
    %p127 = scmp.eq.s32.totalorder %s19, 1
    %p128 = por %p126, %p127
    %p130 = scmp.ne.s32.totalorder %s115, %s129
    %p131 = scmp.eq.s32.totalorder %s19, 0
    %p132 = por %p130, %p131
    %s134 = sadd.s32 %s133, 1
    %p137 = scmp.eq.s32.totalorder %s13, 1
    %p138 = scmp.ne.s32.totalorder %s133, %s135
    %p139 = scmp.eq.s32.totalorder %s13, 0
    %p140 = por %p138, %p139
    %p141 = scmp.ne.s32.totalorder %s133, %s135
    %p142 = scmp.eq.s32.totalorder %s18, 1
    %p143 = por %p141, %p142
    %p144 = scmp.ne.s32.totalorder %s135, %s136
    %p145 = scmp.eq.s32.totalorder %s18, 0
    %p146 = por %p144, %p145
    %p147 = scmp.ne.s32.totalorder %s135, %s136
    %p148 = scmp.eq.s32.totalorder %s19, 1
    %p149 = por %p147, %p148
    %p151 = scmp.ne.s32.totalorder %s136, %s150
    %p152 = scmp.eq.s32.totalorder %s19, 0
    %p153 = por %p151, %p152
    %s155 = sadd.s32 %s154, 1
    %p158 = scmp.eq.s32.totalorder %s13, 1
    %p159 = scmp.ne.s32.totalorder %s154, %s156
    %p160 = scmp.eq.s32.totalorder %s13, 0
    %p161 = por %p159, %p160
    %p162 = scmp.ne.s32.totalorder %s154, %s156
    %p163 = scmp.eq.s32.totalorder %s18, 1
    %p164 = por %p162, %p163
    %p165 = scmp.ne.s32.totalorder %s156, %s157
    %p166 = scmp.eq.s32.totalorder %s18, 0
    %p167 = por %p165, %p166
    %p168 = scmp.ne.s32.totalorder %s156, %s157
    %p169 = scmp.eq.s32.totalorder %s19, 1
    %p170 = por %p168, %p169
    %p172 = scmp.ne.s32.totalorder %s157, %s171
    %p173 = scmp.eq.s32.totalorder %s19, 0
    %p174 = por %p172, %p173
    %s176 = sadd.s32 %s175, 1
    %p179 = scmp.eq.s32.totalorder %s13, 1
    %p180 = scmp.ne.s32.totalorder %s175, %s177
    %p181 = scmp.eq.s32.totalorder %s13, 0
    %p182 = por %p180, %p181
    %p183 = scmp.ne.s32.totalorder %s175, %s177
    %p184 = scmp.eq.s32.totalorder %s18, 1
    %p185 = por %p183, %p184
    %p186 = scmp.ne.s32.totalorder %s177, %s178
    %p187 = scmp.eq.s32.totalorder %s18, 0
    %p188 = por %p186, %p187
    %p189 = scmp.ne.s32.totalorder %s177, %s178
    %p190 = scmp.eq.s32.totalorder %s19, 1
    %p191 = por %p189, %p190
    %p193 = scmp.ne.s32.totalorder %s178, %s192
    %p194 = scmp.eq.s32.totalorder %s19, 0
    %p195 = por %p193, %p194
    %s196 = ssub.s32 %s20, %s39
    %s197 = ssub.s32 %s21, %s35
    %s198 = sor.u32 %s196, %s197
    %p199 = scmp.eq.s32.totalorder %s198, 0
    %s201 = sadd.s32 %s200, 1
    %s202 = scalar_select %p199, %s200, %s201
    %p205 = pneg %p199
    %p206 = scmp.eq.s32.totalorder %s13, 1
    %p207 = por %p205, %p206
    %p208 = scmp.ne.s32.totalorder %s200, %s203
    %p209 = scmp.eq.s32.totalorder %s13, 0
    %p210 = por %p208, %p209
    %p211 = scmp.ne.s32.totalorder %s200, %s203
    %p212 = scmp.eq.s32.totalorder %s18, 1
    %p213 = por %p211, %p212
    %p214 = scmp.ne.s32.totalorder %s203, %s204
    %p215 = scmp.eq.s32.totalorder %s18, 0
    %p216 = por %p214, %p215
    %p217 = scmp.ne.s32.totalorder %s203, %s204
    %p218 = scmp.eq.s32.totalorder %s19, 1
    %p219 = por %p217, %p218
    %p221 = scmp.ne.s32.totalorder %s204, %s220
    %p222 = scmp.eq.s32.totalorder %s19, 0
    %p223 = por %p221, %p222
    %p224 = scmp.le.s32.totalorder 1, %s13
    %p225 = scmp.lt.s32.totalorder %s13, 3
    %p226 = pnand %p224, %p225
    %p227 = pneg %p226
    // Predicated region
    $region9: #{tnet_forward.3} parent=5 // pred_check
      _
    $region10: #{tnet_forward.3} parent=5 // pred_check_branch
      %229 = sbr.rel (%p226) target = $region12
    $region11: #{tnet_forward.3} parent=5 // pred_region
      %s230 = ssub.s32 %s13, 1
      // Predicated region
      $region13: #{tnet_forward.3} parent=11 // pred_check
        %p231 = pneg %p83
      $region14: #{tnet_forward.3} parent=11 // pred_check_branch
        %233 = sbr.rel (%p231) target = $region16
      $region15: #{tnet_forward.3} parent=11 // pred_region
        _
      $region16: #{tnet_forward.3} parent=11 // pred_fallthru
        _
      // Predicated region
      $region17: #{tnet_forward.3} parent=11 // pred_check
        %p234 = pneg %p104
      $region18: #{tnet_forward.3} parent=11 // pred_check_branch
        %236 = sbr.rel (%p234) target = $region20
      $region19: #{tnet_forward.3} parent=11 // pred_region
        _
      $region20: #{tnet_forward.3} parent=11 // pred_fallthru
        _
      // Predicated region
      $region21: #{tnet_forward.3} parent=11 // pred_check
        %p237 = pneg %p125
      $region22: #{tnet_forward.3} parent=11 // pred_check_branch
        %239 = sbr.rel (%p237) target = $region24
      $region23: #{tnet_forward.3} parent=11 // pred_region
        _
      $region24: #{tnet_forward.3} parent=11 // pred_fallthru
        _
      // Predicated region
      $region25: #{tnet_forward.3} parent=11 // pred_check
        %p240 = pneg %p146
      $region26: #{tnet_forward.3} parent=11 // pred_check_branch
        %242 = sbr.rel (%p240) target = $region28
      $region27: #{tnet_forward.3} parent=11 // pred_region
        _
      $region28: #{tnet_forward.3} parent=11 // pred_fallthru
        _
      // Predicated region
      $region29: #{tnet_forward.3} parent=11 // pred_check
        %p243 = pneg %p167
      $region30: #{tnet_forward.3} parent=11 // pred_check_branch
        %245 = sbr.rel (%p243) target = $region32
      $region31: #{tnet_forward.3} parent=11 // pred_region
        _
      $region32: #{tnet_forward.3} parent=11 // pred_fallthru
        _
      // Predicated region
      $region33: #{tnet_forward.3} parent=11 // pred_check
        %p246 = pneg %p188
      $region34: #{tnet_forward.3} parent=11 // pred_check_branch
        %248 = sbr.rel (%p246) target = $region36
      $region35: #{tnet_forward.3} parent=11 // pred_region
        _
      $region36: #{tnet_forward.3} parent=11 // pred_fallthru
        _
    $region12: #{tnet_forward.3} parent=5 // pred_fallthru
      _
    %p249 = scmp.lt.s32.totalorder %s13, 2
    // Predicated region
    $region37: #{tnet_forward.3} parent=5 // pred_check
      %p250 = pneg %p249
    $region38: #{tnet_forward.3} parent=5 // pred_check_branch
      %252 = sbr.rel (%p250) target = $region40
    $region39: #{tnet_forward.3} parent=5 // pred_region
      // Predicated region
      $region41: #{tnet_forward.3} parent=39 // pred_check
        %p253 = pneg %p56
      $region42: #{tnet_forward.3} parent=39 // pred_check_branch
        %255 = sbr.rel (%p253) target = $region44
      $region43: #{tnet_forward.3} parent=39 // pred_region
        %s256 = sadd.s32 %s21, %s22
        %p257 = scmp.lt.s32.totalorder %s20, 1
        %s258 = scalar_select %p257, %s20, 1
        %p259 = scmp.lt.s32.totalorder %s256, 0
        %s260 = scalar_select %p259, %s256, 0
        %s261 = sadd.s32 %s260, %s258
        %s262 = smul.addr %s261, 4
        %s263 = scalar_lea.vmem %s0, %s262
        %s264 = sadd.s32 %s21, %s22
      $region44: #{tnet_forward.3} parent=39 // pred_fallthru
        _
    $region40: #{tnet_forward.3} parent=5 // pred_fallthru
      _
    %p265 = scmp.le.s32.totalorder 1, %s13
    %p266 = scmp.lt.s32.totalorder %s13, 3
    %p267 = pnand %p265, %p266
    %p268 = pneg %p267
    // Predicated region
    $region45: #{tnet_forward.3} parent=5 // pred_check
      _
    $region46: #{tnet_forward.3} parent=5 // pred_check_branch
      %270 = sbr.rel (%p267) target = $region48
    $region47: #{tnet_forward.3} parent=5 // pred_region
      %s271 = ssub.s32 %s13, 1
      %s272 = sadd.s32 %s24, %s25
      %p273 = scmp.lt.s32.totalorder %s23, 1
      %s274 = scalar_select %p273, %s23, 1
      %p275 = scmp.lt.s32.totalorder %s272, 0
      %s276 = scalar_select %p275, %s272, 0
      %s277 = sadd.s32 %s276, %s274
      %s278 = smul.addr %s277, 4
      %s279 = scalar_lea.vmem %s0, %s278
      %p280 = pneg %p62
      %p281 = pneg %p59
      %p282 = pneg %p83
      %p283 = pneg %p80
      %p284 = pneg %p104
      %p285 = pneg %p101
      %p286 = pneg %p125
      %p287 = pneg %p122
      %p288 = pneg %p146
      %p289 = pneg %p143
      %p290 = pneg %p167
      %p291 = pneg %p164
      %p292 = pneg %p188
      %p293 = pneg %p185
      %p294 = pneg %p216
      %p295 = pneg %p213
      %p296 = scmp.lt.s32.totalorder %s23, 1
      %s297 = scalar_select %p296, %s23, 1
      %p298 = scmp.lt.s32.totalorder %s24, 0
      %s299 = scalar_select %p298, %s24, 0
      %s300 = smul.addr %s299, 2
      %s301 = smul.addr %s297, 2
      %s302 = sadd.s32 %s300, %s301
      %s303 = scalar_lea.vmem %s7, %s302
      %s304 = sadd.s32 %s24, %s25
      %p305 = scmp.lt.s32.totalorder %s23, 1
      %s306 = scalar_select %p305, %s23, 1
      %p307 = scmp.lt.s32.totalorder %s304, 0
      %s308 = scalar_select %p307, %s304, 0
      %s309 = sadd.s32 %s308, %s306
      %s310 = smul.addr %s309, 4
      %s311 = scalar_lea.vmem %s0, %s310
      %s312 = sadd.s32 %s24, %s25
      %p313 = scmp.lt.s32.totalorder %s23, 1
      %s314 = scalar_select %p313, %s23, 1
      %p315 = scmp.lt.s32.totalorder %s24, 0
      %s316 = scalar_select %p315, %s24, 0
      %s317 = smul.addr %s316, 2
      %s318 = smul.addr %s314, 2
      %s319 = sadd.s32 %s317, %s318
      %s320 = scalar_lea.vmem %s7, %s319
      %v322 = vld [vmem:[%s311] sm:$0x7]
      %v323 = vld [vmem:[%s1] sm:$0xff]
      %v324 = vld [vmem:[%s1 + $0x8] sm:$0xff]
      %v325 = vld [vmem:[%s1 + $0x10] sm:$0xff]
      %v326 = vld [vmem:[%s1 + $0x18] sm:$0xff]
      %v327 = vld [vmem:[%s1 + $0x20] sm:$0xff]
      %v328 = vld [vmem:[%s1 + $0x28] sm:$0xff]
      %v329 = vld [vmem:[%s1 + $0x30] sm:$0xff]
      %v330 = vld [vmem:[%s1 + $0x38] sm:$0xff]
      %332 = vset.pattern.permute.xlu0 0
      %333 = vperm.xlu0 %332, %v323
      %v334 = vpop.permute.xlu0 %333
      %337 = vset.pattern.permute.xlu0 0
      %338 = vperm.xlu0 %337, %v324
      %v339 = vpop.permute.xlu0 %338
      %342 = vset.pattern.permute.xlu0 0
      %343 = vperm.xlu0 %342, %v325
      %v344 = vpop.permute.xlu0 %343
      %347 = vset.pattern.permute.xlu0 0
      %348 = vperm.xlu0 %347, %v326
      %v349 = vpop.permute.xlu0 %348
      %352 = vset.pattern.permute.xlu0 0
      %353 = vperm.xlu0 %352, %v327
      %v354 = vpop.permute.xlu0 %353
      %357 = vset.pattern.permute.xlu0 0
      %358 = vperm.xlu0 %357, %v328
      %v359 = vpop.permute.xlu0 %358
      %362 = vset.pattern.permute.xlu0 0
      %363 = vperm.xlu0 %362, %v329
      %v364 = vpop.permute.xlu0 %363
      %367 = vset.pattern.permute.xlu0 0
      %368 = vperm.xlu0 %367, %v330
      %v369 = vpop.permute.xlu0 %368
      %v371 = vlaneseq
      %v372 = vshrl.u32 %v371, 7
      %v373 = vsub.s32 0, %v372
      %v374 = vrot.slane %v322, %v373
      %v375 = vmul.f32 %v334, %v374
      %v376 = vmul.f32 %v339, %v374
      %v377 = vmul.f32 %v344, %v374
      %v378 = vmul.f32 %v349, %v374
      %v379 = vmul.f32 %v354, %v374
      %v380 = vmul.f32 %v359, %v374
      %v381 = vmul.f32 %v364, %v374
      %v382 = vmul.f32 %v369, %v374
      %383 = vset.pattern.permute.xlu0 1
      %384 = vperm.xlu0 %383, %v323
      %v385 = vpop.permute.xlu0 %384
      %387 = vset.pattern.permute.xlu0 1
      %388 = vperm.xlu0 %387, %v324
      %v389 = vpop.permute.xlu0 %388
      %391 = vset.pattern.permute.xlu0 1
      %392 = vperm.xlu0 %391, %v325
      %v393 = vpop.permute.xlu0 %392
      %395 = vset.pattern.permute.xlu0 1
      %396 = vperm.xlu0 %395, %v326
      %v397 = vpop.permute.xlu0 %396
      %399 = vset.pattern.permute.xlu0 1
      %400 = vperm.xlu0 %399, %v327
      %v401 = vpop.permute.xlu0 %400
      %403 = vset.pattern.permute.xlu0 1
      %404 = vperm.xlu0 %403, %v328
      %v405 = vpop.permute.xlu0 %404
      %407 = vset.pattern.permute.xlu0 1
      %408 = vperm.xlu0 %407, %v329
      %v409 = vpop.permute.xlu0 %408
      %411 = vset.pattern.permute.xlu0 1
      %412 = vperm.xlu0 %411, %v330
      %v413 = vpop.permute.xlu0 %412
      %v415 = vlaneseq
      %v416 = vshrl.u32 %v415, 7
      %v417 = vsub.s32 1, %v416
      %v418 = vrot.slane %v322, %v417
      %v419 = vmul.f32 %v385, %v418
      %v420 = vmul.f32 %v389, %v418
      %v421 = vmul.f32 %v393, %v418
      %v422 = vmul.f32 %v397, %v418
      %v423 = vmul.f32 %v401, %v418
      %v424 = vmul.f32 %v405, %v418
      %v425 = vmul.f32 %v409, %v418
      %v426 = vmul.f32 %v413, %v418
      %v427 = vadd.f32 %v375, %v419
      %v428 = vadd.f32 %v376, %v420
      %v429 = vadd.f32 %v377, %v421
      %v430 = vadd.f32 %v378, %v422
      %v431 = vadd.f32 %v379, %v423
      %v432 = vadd.f32 %v380, %v424
      %v433 = vadd.f32 %v381, %v425
      %v434 = vadd.f32 %v382, %v426
      %435 = vset.pattern.permute.xlu0 2
      %436 = vperm.xlu0 %435, %v323
      %v437 = vpop.permute.xlu0 %436
      %439 = vset.pattern.permute.xlu0 2
      %440 = vperm.xlu0 %439, %v324
      %v441 = vpop.permute.xlu0 %440
      %443 = vset.pattern.permute.xlu0 2
      %444 = vperm.xlu0 %443, %v325
      %v445 = vpop.permute.xlu0 %444
      %447 = vset.pattern.permute.xlu0 2
      %448 = vperm.xlu0 %447, %v326
      %v449 = vpop.permute.xlu0 %448
      %451 = vset.pattern.permute.xlu0 2
      %452 = vperm.xlu0 %451, %v327
      %v453 = vpop.permute.xlu0 %452
      %455 = vset.pattern.permute.xlu0 2
      %456 = vperm.xlu0 %455, %v328
      %v457 = vpop.permute.xlu0 %456
      %459 = vset.pattern.permute.xlu0 2
      %460 = vperm.xlu0 %459, %v329
      %v461 = vpop.permute.xlu0 %460
      %463 = vset.pattern.permute.xlu0 2
      %464 = vperm.xlu0 %463, %v330
      %v465 = vpop.permute.xlu0 %464
      %v467 = vlaneseq
      %v468 = vshrl.u32 %v467, 7
      %v469 = vsub.s32 2, %v468
      %v470 = vrot.slane %v322, %v469
      %v471 = vmul.f32 %v437, %v470
      %v472 = vmul.f32 %v441, %v470
      %v473 = vmul.f32 %v445, %v470
      %v474 = vmul.f32 %v449, %v470
      %v475 = vmul.f32 %v453, %v470
      %v476 = vmul.f32 %v457, %v470
      %v477 = vmul.f32 %v461, %v470
      %v478 = vmul.f32 %v465, %v470
      %v479 = vadd.f32 %v427, %v471
      %v480 = vadd.f32 %v428, %v472
      %v481 = vadd.f32 %v429, %v473
      %v482 = vadd.f32 %v430, %v474
      %v483 = vadd.f32 %v431, %v475
      %v484 = vadd.f32 %v432, %v476
      %v485 = vadd.f32 %v433, %v477
      %v486 = vadd.f32 %v434, %v478
      %v487 = vld [vmem:[%s2] sm:$0xff]
      %v488 = vld [vmem:[%s2 + $0x8] sm:$0xff]
      %v489 = vld [vmem:[%s2 + $0x10] sm:$0xff]
      %v490 = vld [vmem:[%s2 + $0x18] sm:$0xff]
      %v491 = vld [vmem:[%s2 + $0x20] sm:$0xff]
      %v492 = vld [vmem:[%s2 + $0x28] sm:$0xff]
      %v493 = vld [vmem:[%s2 + $0x30] sm:$0xff]
      %v494 = vld [vmem:[%s2 + $0x38] sm:$0xff]
      %496 = vset.pattern.permute.xlu0 0
      %497 = vperm.xlu0 %496, %v487
      %v498 = vpop.permute.xlu0 %497
      %501 = vset.pattern.permute.xlu0 0
      %502 = vperm.xlu0 %501, %v488
      %v503 = vpop.permute.xlu0 %502
      %506 = vset.pattern.permute.xlu0 0
      %507 = vperm.xlu0 %506, %v489
      %v508 = vpop.permute.xlu0 %507
      %511 = vset.pattern.permute.xlu0 0
      %512 = vperm.xlu0 %511, %v490
      %v513 = vpop.permute.xlu0 %512
      %516 = vset.pattern.permute.xlu0 0
      %517 = vperm.xlu0 %516, %v491
      %v518 = vpop.permute.xlu0 %517
      %521 = vset.pattern.permute.xlu0 0
      %522 = vperm.xlu0 %521, %v492
      %v523 = vpop.permute.xlu0 %522
      %526 = vset.pattern.permute.xlu0 0
      %527 = vperm.xlu0 %526, %v493
      %v528 = vpop.permute.xlu0 %527
      %531 = vset.pattern.permute.xlu0 0
      %532 = vperm.xlu0 %531, %v494
      %v533 = vpop.permute.xlu0 %532
      %v535 = vadd.f32 %v479, %v498
      %v536 = vadd.f32 %v480, %v503
      %v537 = vadd.f32 %v481, %v508
      %v538 = vadd.f32 %v482, %v513
      %v539 = vadd.f32 %v483, %v518
      %v540 = vadd.f32 %v484, %v523
      %v541 = vadd.f32 %v485, %v528
      %v542 = vadd.f32 %v486, %v533
      %v543 = vmax.f32 %v535, 0.0
      %v544 = vmax.f32 %v536, 0.0
      %v545 = vmax.f32 %v537, 0.0
      %v546 = vmax.f32 %v538, 0.0
      %v547 = vmax.f32 %v539, 0.0
      %v548 = vmax.f32 %v540, 0.0
      %v549 = vmax.f32 %v541, 0.0
      %v550 = vmax.f32 %v542, 0.0
      %551 = vxpose.xlu0.b32.start [1/16] %v543, 128
      %552 = vxpose.xlu0.b32.cont [2/16] %v544, 128
      %553 = vxpose.xlu0.b32.cont [3/16] %v545, 128
      %554 = vxpose.xlu0.b32.cont [4/16] %v546, 128
      %555 = vxpose.xlu0.b32.cont [5/16] %v547, 128
      %556 = vxpose.xlu0.b32.cont [6/16] %v548, 128
      %557 = vxpose.xlu0.b32.cont [7/16] %v549, 128
      %558 = vxpose.xlu0.b32.cont [8/16] %v550, 128
      %559 = vxpose.xlu0.b32.cont [9/16] 0.0, 128
      %560 = vxpose.xlu0.b32.cont [10/16] 0.0, 128
      %561 = vxpose.xlu0.b32.cont [11/16] 0.0, 128
      %562 = vxpose.xlu0.b32.cont [12/16] 0.0, 128
      %563 = vxpose.xlu0.b32.cont [13/16] 0.0, 128
      %564 = vxpose.xlu0.b32.cont [14/16] 0.0, 128
      %565 = vxpose.xlu0.b32.cont [15/16] 0.0, 128
      %566 = vxpose.xlu0.b32.end [16/16] 0.0, 128
      %v567 = vpop.trf.xlu0
      %v568 = vpop.trf.xlu0
      %v569 = vpop.trf.xlu0
      %v570 = vpop.trf.xlu0
      %v571 = vpop.trf.xlu0
      %v572 = vpop.trf.xlu0
      %v573 = vpop.trf.xlu0
      %v574 = vpop.trf.xlu0
      %v575 = vpop.trf.xlu0
      %v576 = vpop.trf.xlu0
      %v577 = vpop.trf.xlu0
      %v578 = vpop.trf.xlu0
      %v579 = vpop.trf.xlu0
      %v580 = vpop.trf.xlu0
      %v581 = vpop.trf.xlu0
      %v582 = vpop.trf.xlu0
      %v583 = vpack.c.bf16 %v568, %v567
      %v584 = vpack.c.bf16 %v570, %v569
      %v585 = vpack.c.bf16 %v572, %v571
      %v586 = vpack.c.bf16 %v574, %v573
      %v587 = vpack.c.bf16 %v576, %v575
      %v588 = vpack.c.bf16 %v578, %v577
      %v589 = vpack.c.bf16 %v580, %v579
      %v590 = vpack.c.bf16 %v582, %v581
      %v591 = vld [vmem:[%s3] sm:$0xf]
      %v592 = vld [vmem:[%s3 + $0x4] sm:$0xf]
      %v593 = vld [vmem:[%s3 + $0x8] sm:$0xf]
      %v594 = vld [vmem:[%s3 + $0xc] sm:$0xf]
      %v595 = vld [vmem:[%s3 + $0x10] sm:$0xf]
      %v596 = vld [vmem:[%s3 + $0x14] sm:$0xf]
      %v597 = vld [vmem:[%s3 + $0x18] sm:$0xf]
      %v598 = vld [vmem:[%s3 + $0x1c] sm:$0xf]
      %v599 = vld [vmem:[%s4] sm:$0x1]
      %v601 = vlaneseq
      %v602 = vshrl.u32 %v601, 7
      %v603 = vsub.s32 0, %v602
      %v604 = vrot.slane %v599, %v603
      %v614 = vunpack.c.l.b16 %v591
      %v615 = vunpack.c.l.b16 %v592
      %v616 = vunpack.c.l.b16 %v593
      %v617 = vunpack.c.l.b16 %v594
      %v618 = vunpack.c.l.b16 %v595
      %v619 = vunpack.c.l.b16 %v596
      %v620 = vunpack.c.l.b16 %v597
      %v621 = vunpack.c.l.b16 %v598
      %v622 = vpack.c.b16 %v615, %v614
      %v623 = vpack.c.b16 %v617, %v616
      %v624 = vpack.c.b16 %v619, %v618
      %v625 = vpack.c.b16 %v621, %v620
      %vm630 = vcmask 523264
      %v632 = vsel %vm630, %v583, 0
      %v635 = vsel %vm630, %v584, 0
      %v638 = vsel %vm630, %v585, 0
      %v641 = vsel %vm630, %v586, 0
      %v644 = vsel %vm630, %v587, 0
      %v647 = vsel %vm630, %v588, 0
      %v650 = vsel %vm630, %v589, 0
      %v653 = vsel %vm630, %v590, 0
      %655 = vmatprep.subr.bf16.mxu0 0
      %656 = vmatpush1.bf16.msra.mxu0 0
      %657 = vmatprep.subr.bf16.mxu0 0
      %658 = vmatpush1.bf16.msra.mxu0 0
      %659 = vmatprep.subr.bf16.mxu0 0
      %660 = vmatpush1.bf16.msra.mxu0 0
      %661 = vmatprep.subr.bf16.mxu0 0
      %662 = vmatpush1.bf16.msra.mxu0 0
      %663 = vmatprep.subr.bf16.mxu0 0
      %664 = vmatpush1.bf16.msra.mxu0 %v625
      %665 = vmatprep.subr.bf16.mxu0 0
      %666 = vmatpush1.bf16.msra.mxu0 %v624
      %667 = vmatprep.subr.bf16.mxu0 0
      %668 = vmatpush1.bf16.msra.mxu0 %v623
      %669 = vmatprep.subr.bf16.mxu0 0
      %670 = vmatpush1.bf16.msra.mxu0 %v622
      %671 = vmatprep.subr.bf16.mxu0 0
      %672 = vmatpush2.bf16.msra.mxu0 0
      %673 = vmatprep.subr.bf16.mxu0 0
      %674 = vmatpush2.bf16.msra.mxu0 0
      %675 = vmatprep.subr.bf16.mxu0 0
      %676 = vmatpush2.bf16.msra.mxu0 0
      %677 = vmatprep.subr.bf16.mxu0 0
      %678 = vmatpush2.bf16.msra.mxu0 0
      %679 = vmatprep.subr.bf16.mxu0 0
      %680 = vmatpush2.bf16.msra.mxu0 0
      %681 = vmatprep.subr.bf16.mxu0 0
      %682 = vmatpush2.bf16.msra.mxu0 0
      %683 = vmatprep.subr.bf16.mxu0 0
      %684 = vmatpush2.bf16.msra.mxu0 0
      %685 = vmatprep.subr.bf16.mxu0 0
      %686 = vmatpush2.bf16.msra.mxu0 0
      %687 = vmatprep.mubr.bf16.mxu0 0
      %688 = vmatmul.mubr.bf16.gmra.mxu0 %v632
      %v689 = vpop.f32.mrf.mxu0
      %v690 = vadd.f32 %v604, %v689
      %v691 = vpop.f32.mrf.mxu0
      %v692 = vpop.f32.mrf.mxu0
      %v693 = vadd.f32 %v604, %v692
      %v694 = vpop.f32.mrf.mxu0
      %695 = vmatprep.mubr.bf16.mxu0 0
      %696 = vmatmul.mubr.bf16.gmra.mxu0 %v635
      %v697 = vpop.f32.mrf.mxu0
      %v698 = vadd.f32 %v604, %v697
      %v699 = vpop.f32.mrf.mxu0
      %v700 = vpop.f32.mrf.mxu0
      %v701 = vadd.f32 %v604, %v700
      %v702 = vpop.f32.mrf.mxu0
      %703 = vmatprep.mubr.bf16.mxu0 0
      %704 = vmatmul.mubr.bf16.gmra.mxu0 %v638
      %v705 = vpop.f32.mrf.mxu0
      %v706 = vadd.f32 %v604, %v705
      %v707 = vpop.f32.mrf.mxu0
      %v708 = vpop.f32.mrf.mxu0
      %v709 = vadd.f32 %v604, %v708
      %v710 = vpop.f32.mrf.mxu0
      %711 = vmatprep.mubr.bf16.mxu0 0
      %712 = vmatmul.mubr.bf16.gmra.mxu0 %v641
      %v713 = vpop.f32.mrf.mxu0
      %v714 = vadd.f32 %v604, %v713
      %v715 = vpop.f32.mrf.mxu0
      %v716 = vpop.f32.mrf.mxu0
      %v717 = vadd.f32 %v604, %v716
      %v718 = vpop.f32.mrf.mxu0
      %719 = vmatprep.mubr.bf16.mxu0 0
      %720 = vmatmul.mubr.bf16.gmra.mxu0 %v644
      %v721 = vpop.f32.mrf.mxu0
      %v722 = vadd.f32 %v604, %v721
      %v723 = vpop.f32.mrf.mxu0
      %v724 = vpop.f32.mrf.mxu0
      %v725 = vadd.f32 %v604, %v724
      %v726 = vpop.f32.mrf.mxu0
      %727 = vmatprep.mubr.bf16.mxu0 0
      %728 = vmatmul.mubr.bf16.gmra.mxu0 %v647
      %v729 = vpop.f32.mrf.mxu0
      %v730 = vadd.f32 %v604, %v729
      %v731 = vpop.f32.mrf.mxu0
      %v732 = vpop.f32.mrf.mxu0
      %v733 = vadd.f32 %v604, %v732
      %v734 = vpop.f32.mrf.mxu0
      %735 = vmatprep.mubr.bf16.mxu0 0
      %736 = vmatmul.mubr.bf16.gmra.mxu0 %v650
      %v737 = vpop.f32.mrf.mxu0
      %v738 = vadd.f32 %v604, %v737
      %v739 = vpop.f32.mrf.mxu0
      %v740 = vpop.f32.mrf.mxu0
      %v741 = vadd.f32 %v604, %v740
      %v742 = vpop.f32.mrf.mxu0
      %743 = vmatprep.mubr.bf16.mxu0 0
      %744 = vmatmul.mubr.bf16.gmra.mxu0 %v653
      %v745 = vpop.f32.mrf.mxu0
      %v746 = vadd.f32 %v604, %v745
      %v747 = vpop.f32.mrf.mxu0
      %v748 = vpop.f32.mrf.mxu0
      %v749 = vadd.f32 %v604, %v748
      %v750 = vpop.f32.mrf.mxu0
      %751 = vdwg.mxu0
      %v752 = vmax.f32 %v690, 0.0
      %v753 = vmax.f32 %v693, 0.0
      %v754 = vmax.f32 %v698, 0.0
      %v755 = vmax.f32 %v701, 0.0
      %v756 = vmax.f32 %v706, 0.0
      %v757 = vmax.f32 %v709, 0.0
      %v758 = vmax.f32 %v714, 0.0
      %v759 = vmax.f32 %v717, 0.0
      %v760 = vmax.f32 %v722, 0.0
      %v761 = vmax.f32 %v725, 0.0
      %v762 = vmax.f32 %v730, 0.0
      %v763 = vmax.f32 %v733, 0.0
      %v764 = vmax.f32 %v738, 0.0
      %v765 = vmax.f32 %v741, 0.0
      %v766 = vmax.f32 %v746, 0.0
      %v767 = vmax.f32 %v749, 0.0
      %v768 = vpack.c.bf16 %v753, %v752
      %v769 = vpack.c.bf16 %v755, %v754
      %v770 = vpack.c.bf16 %v757, %v756
      %v771 = vpack.c.bf16 %v759, %v758
      %v772 = vpack.c.bf16 %v761, %v760
      %v773 = vpack.c.bf16 %v763, %v762
      %v774 = vpack.c.bf16 %v765, %v764
      %v775 = vpack.c.bf16 %v767, %v766
      %v776 = vld [vmem:[%s5] sm:$0xff]
      %v777 = vld [vmem:[%s5 + $0x8] sm:$0xff]
      %v778 = vld [vmem:[%s5 + $0x10] sm:$0xff]
      %v779 = vld [vmem:[%s5 + $0x18] sm:$0xff]
      %v780 = vld [vmem:[%s5 + $0x20] sm:$0xff]
      %v781 = vld [vmem:[%s5 + $0x28] sm:$0xff]
      %v782 = vld [vmem:[%s5 + $0x30] sm:$0xff]
      %v783 = vld [vmem:[%s5 + $0x38] sm:$0xff]
      %v784 = vld [vmem:[%s5 + $0x40] sm:$0xff]
      %v785 = vld [vmem:[%s5 + $0x48] sm:$0xff]
      %v786 = vld [vmem:[%s5 + $0x50] sm:$0xff]
      %v787 = vld [vmem:[%s5 + $0x58] sm:$0xff]
      %v788 = vld [vmem:[%s5 + $0x60] sm:$0xff]
      %v789 = vld [vmem:[%s5 + $0x68] sm:$0xff]
      %v790 = vld [vmem:[%s5 + $0x70] sm:$0xff]
      %v791 = vld [vmem:[%s5 + $0x78] sm:$0xff]
      %v792 = vld [vmem:[%s6] sm:$0x3]
      %v794 = vlaneseq
      %v795 = vshrl.u32 %v794, 7
      %v796 = vsub.s32 0, %v795
      %v797 = vrot.slane %v792, %v796
      %v798 = vlaneseq
      %v799 = vshrl.u32 %v798, 7
      %v800 = vsub.s32 1, %v799
      %v801 = vrot.slane %v792, %v800
      %v820 = vunpack.c.l.b16 %v776
      %v821 = vunpack.c.h.b16 %v776
      %v822 = vunpack.c.l.b16 %v777
      %v823 = vunpack.c.h.b16 %v777
      %v824 = vunpack.c.l.b16 %v778
      %v825 = vunpack.c.h.b16 %v778
      %v826 = vunpack.c.l.b16 %v779
      %v827 = vunpack.c.h.b16 %v779
      %v828 = vunpack.c.l.b16 %v780
      %v829 = vunpack.c.h.b16 %v780
      %v830 = vunpack.c.l.b16 %v781
      %v831 = vunpack.c.h.b16 %v781
      %v832 = vunpack.c.l.b16 %v782
      %v833 = vunpack.c.h.b16 %v782
      %v834 = vunpack.c.l.b16 %v783
      %v835 = vunpack.c.h.b16 %v783
      %v836 = vunpack.c.l.b16 %v784
      %v837 = vunpack.c.h.b16 %v784
      %v838 = vunpack.c.l.b16 %v785
      %v839 = vunpack.c.h.b16 %v785
      %v840 = vunpack.c.l.b16 %v786
      %v841 = vunpack.c.h.b16 %v786
      %v842 = vunpack.c.l.b16 %v787
      %v843 = vunpack.c.h.b16 %v787
      %v844 = vunpack.c.l.b16 %v788
      %v845 = vunpack.c.h.b16 %v788
      %v846 = vunpack.c.l.b16 %v789
      %v847 = vunpack.c.h.b16 %v789
      %v848 = vunpack.c.l.b16 %v790
      %v849 = vunpack.c.h.b16 %v790
      %v850 = vunpack.c.l.b16 %v791
      %v851 = vunpack.c.h.b16 %v791
      %v852 = vpack.c.b16 %v822, %v820
      %v853 = vpack.c.b16 %v823, %v821
      %v854 = vpack.c.b16 %v826, %v824
      %v855 = vpack.c.b16 %v827, %v825
      %v856 = vpack.c.b16 %v830, %v828
      %v857 = vpack.c.b16 %v831, %v829
      %v858 = vpack.c.b16 %v834, %v832
      %v859 = vpack.c.b16 %v835, %v833
      %v860 = vpack.c.b16 %v838, %v836
      %v861 = vpack.c.b16 %v839, %v837
      %v862 = vpack.c.b16 %v842, %v840
      %v863 = vpack.c.b16 %v843, %v841
      %v864 = vpack.c.b16 %v846, %v844
      %v865 = vpack.c.b16 %v847, %v845
      %v866 = vpack.c.b16 %v850, %v848
      %v867 = vpack.c.b16 %v851, %v849
      %884 = vmatprep.subr.bf16.mxu0 %v867
      %885 = vmatpush1.bf16.msra.mxu0 %v866
      %886 = vmatprep.subr.bf16.mxu0 %v865
      %887 = vmatpush1.bf16.msra.mxu0 %v864
      %888 = vmatprep.subr.bf16.mxu0 %v863
      %889 = vmatpush1.bf16.msra.mxu0 %v862
      %890 = vmatprep.subr.bf16.mxu0 %v861
      %891 = vmatpush1.bf16.msra.mxu0 %v860
      %892 = vmatprep.subr.bf16.mxu0 %v859
      %893 = vmatpush1.bf16.msra.mxu0 %v858
      %894 = vmatprep.subr.bf16.mxu0 %v857
      %895 = vmatpush1.bf16.msra.mxu0 %v856
      %896 = vmatprep.subr.bf16.mxu0 %v855
      %897 = vmatpush1.bf16.msra.mxu0 %v854
      %898 = vmatprep.subr.bf16.mxu0 %v853
      %899 = vmatpush1.bf16.msra.mxu0 %v852
      %900 = vmatprep.subr.bf16.mxu0 0
      %901 = vmatpush2.bf16.msra.mxu0 0
      %902 = vmatprep.subr.bf16.mxu0 0
      %903 = vmatpush2.bf16.msra.mxu0 0
      %904 = vmatprep.subr.bf16.mxu0 0
      %905 = vmatpush2.bf16.msra.mxu0 0
      %906 = vmatprep.subr.bf16.mxu0 0
      %907 = vmatpush2.bf16.msra.mxu0 0
      %908 = vmatprep.subr.bf16.mxu0 0
      %909 = vmatpush2.bf16.msra.mxu0 0
      %910 = vmatprep.subr.bf16.mxu0 0
      %911 = vmatpush2.bf16.msra.mxu0 0
      %912 = vmatprep.subr.bf16.mxu0 0
      %913 = vmatpush2.bf16.msra.mxu0 0
      %914 = vmatprep.subr.bf16.mxu0 0
      %915 = vmatpush2.bf16.msra.mxu0 0
      %916 = vmatprep.mubr.bf16.mxu0 0
      %917 = vmatmul.mubr.bf16.gmra.mxu0 %v768
      %v918 = vpop.f32.mrf.mxu0
      %v919 = vadd.f32 %v797, %v918
      %v920 = vpop.f32.mrf.mxu0
      %v921 = vadd.f32 %v801, %v920
      %v922 = vpop.f32.mrf.mxu0
      %v923 = vadd.f32 %v797, %v922
      %v924 = vpop.f32.mrf.mxu0
      %v925 = vadd.f32 %v801, %v924
      %926 = vmatprep.mubr.bf16.mxu0 0
      %927 = vmatmul.mubr.bf16.gmra.mxu0 %v769
      %v928 = vpop.f32.mrf.mxu0
      %v929 = vadd.f32 %v797, %v928
      %v930 = vpop.f32.mrf.mxu0
      %v931 = vadd.f32 %v801, %v930
      %v932 = vpop.f32.mrf.mxu0
      %v933 = vadd.f32 %v797, %v932
      %v934 = vpop.f32.mrf.mxu0
      %v935 = vadd.f32 %v801, %v934
      %936 = vmatprep.mubr.bf16.mxu0 0
      %937 = vmatmul.mubr.bf16.gmra.mxu0 %v770
      %v938 = vpop.f32.mrf.mxu0
      %v939 = vadd.f32 %v797, %v938
      %v940 = vpop.f32.mrf.mxu0
      %v941 = vadd.f32 %v801, %v940
      %v942 = vpop.f32.mrf.mxu0
      %v943 = vadd.f32 %v797, %v942
      %v944 = vpop.f32.mrf.mxu0
      %v945 = vadd.f32 %v801, %v944
      %946 = vmatprep.mubr.bf16.mxu0 0
      %947 = vmatmul.mubr.bf16.gmra.mxu0 %v771
      %v948 = vpop.f32.mrf.mxu0
      %v949 = vadd.f32 %v797, %v948
      %v950 = vpop.f32.mrf.mxu0
      %v951 = vadd.f32 %v801, %v950
      %v952 = vpop.f32.mrf.mxu0
      %v953 = vadd.f32 %v797, %v952
      %v954 = vpop.f32.mrf.mxu0
      %v955 = vadd.f32 %v801, %v954
      %956 = vmatprep.mubr.bf16.mxu0 0
      %957 = vmatmul.mubr.bf16.gmra.mxu0 %v772
      %v958 = vpop.f32.mrf.mxu0
      %v959 = vadd.f32 %v797, %v958
      %v960 = vpop.f32.mrf.mxu0
      %v961 = vadd.f32 %v801, %v960
      %v962 = vpop.f32.mrf.mxu0
      %v963 = vadd.f32 %v797, %v962
      %v964 = vpop.f32.mrf.mxu0
      %v965 = vadd.f32 %v801, %v964
      %966 = vmatprep.mubr.bf16.mxu0 0
      %967 = vmatmul.mubr.bf16.gmra.mxu0 %v773
      %v968 = vpop.f32.mrf.mxu0
      %v969 = vadd.f32 %v797, %v968
      %v970 = vpop.f32.mrf.mxu0
      %v971 = vadd.f32 %v801, %v970
      %v972 = vpop.f32.mrf.mxu0
      %v973 = vadd.f32 %v797, %v972
      %v974 = vpop.f32.mrf.mxu0
      %v975 = vadd.f32 %v801, %v974
      %976 = vmatprep.mubr.bf16.mxu0 0
      %977 = vmatmul.mubr.bf16.gmra.mxu0 %v774
      %v978 = vpop.f32.mrf.mxu0
      %v979 = vadd.f32 %v797, %v978
      %v980 = vpop.f32.mrf.mxu0
      %v981 = vadd.f32 %v801, %v980
      %v982 = vpop.f32.mrf.mxu0
      %v983 = vadd.f32 %v797, %v982
      %v984 = vpop.f32.mrf.mxu0
      %v985 = vadd.f32 %v801, %v984
      %986 = vmatprep.mubr.bf16.mxu0 0
      %987 = vmatmul.mubr.bf16.gmra.mxu0 %v775
      %v988 = vpop.f32.mrf.mxu0
      %v989 = vadd.f32 %v797, %v988
      %v990 = vpop.f32.mrf.mxu0
      %v991 = vadd.f32 %v801, %v990
      %v992 = vpop.f32.mrf.mxu0
      %v993 = vadd.f32 %v797, %v992
      %v994 = vpop.f32.mrf.mxu0
      %v995 = vadd.f32 %v801, %v994
      %996 = vdwg.mxu0
      %v997 = vmax.f32 %v919, 0.0
      %v998 = vmax.f32 %v921, 0.0
      %v999 = vmax.f32 %v923, 0.0
      %v1000 = vmax.f32 %v925, 0.0
      %v1001 = vmax.f32 %v929, 0.0
      %v1002 = vmax.f32 %v931, 0.0
      %v1003 = vmax.f32 %v933, 0.0
      %v1004 = vmax.f32 %v935, 0.0
      %v1005 = vmax.f32 %v939, 0.0
      %v1006 = vmax.f32 %v941, 0.0
      %v1007 = vmax.f32 %v943, 0.0
      %v1008 = vmax.f32 %v945, 0.0
      %v1009 = vmax.f32 %v949, 0.0
      %v1010 = vmax.f32 %v951, 0.0
      %v1011 = vmax.f32 %v953, 0.0
      %v1012 = vmax.f32 %v955, 0.0
      %v1013 = vmax.f32 %v959, 0.0
      %v1014 = vmax.f32 %v961, 0.0
      %v1015 = vmax.f32 %v963, 0.0
      %v1016 = vmax.f32 %v965, 0.0
      %v1017 = vmax.f32 %v969, 0.0
      %v1018 = vmax.f32 %v971, 0.0
      %v1019 = vmax.f32 %v973, 0.0
      %v1020 = vmax.f32 %v975, 0.0
      %v1021 = vmax.f32 %v979, 0.0
      %v1022 = vmax.f32 %v981, 0.0
      %v1023 = vmax.f32 %v983, 0.0
      %v1024 = vmax.f32 %v985, 0.0
      %v1025 = vmax.f32 %v989, 0.0
      %v1026 = vmax.f32 %v991, 0.0
      %v1027 = vmax.f32 %v993, 0.0
      %v1028 = vmax.f32 %v995, 0.0
      %v1029 = vmax.f32 %v997, %v1001
      %v1030 = vmax.f32 %v999, %v1003
      %v1031 = vmax.f32 %v1029, %v1005
      %v1032 = vmax.f32 %v1030, %v1007
      %v1033 = vmax.f32 %v1031, %v1009
      %v1034 = vmax.f32 %v1032, %v1011
      %v1035 = vmax.f32 %v1033, %v1013
      %v1036 = vmax.f32 %v1034, %v1015
      %v1037 = vmax.f32 %v1035, %v1017
      %v1038 = vmax.f32 %v1036, %v1019
      %v1039 = vmax.f32 %v1037, %v1021
      %v1040 = vmax.f32 %v1038, %v1023
      %v1041 = vmax.f32 %v1039, %v1025
      %v1042 = vmax.f32 %v1040, %v1027
      %v1043 = vmax.f32 %v1041, %v1042
      %v1044 = vrot.slane %v1043, 4
      %v1045 = vmax.f32 %v1043, %v1044
      %v1046 = vrot.slane %v1045, 2
      %v1047 = vmax.f32 %v1045, %v1046
      %v1048 = vrot.slane %v1047, 1
      %v1049 = vmax.f32 %v1047, %v1048
      %v1050 = vmax.f32 %v998, %v1002
      %v1051 = vmax.f32 %v1000, %v1004
      %v1052 = vmax.f32 %v1050, %v1006
      %v1053 = vmax.f32 %v1051, %v1008
      %v1054 = vmax.f32 %v1052, %v1010
      %v1055 = vmax.f32 %v1053, %v1012
      %v1056 = vmax.f32 %v1054, %v1014
      %v1057 = vmax.f32 %v1055, %v1016
      %v1058 = vmax.f32 %v1056, %v1018
      %v1059 = vmax.f32 %v1057, %v1020
      %v1060 = vmax.f32 %v1058, %v1022
      %v1061 = vmax.f32 %v1059, %v1024
      %v1062 = vmax.f32 %v1060, %v1026
      %v1063 = vmax.f32 %v1061, %v1028
      %v1064 = vmax.f32 %v1062, %v1063
      %v1065 = vrot.slane %v1064, 4
      %v1066 = vmax.f32 %v1064, %v1065
      %v1067 = vrot.slane %v1066, 2
      %v1068 = vmax.f32 %v1066, %v1067
      %v1069 = vrot.slane %v1068, 1
      %v1070 = vmax.f32 %v1068, %v1069
      %p1071 = scmp.eq.s32.totalorder %s25, 0
      // Predicated region
      $region49: #{tnet_forward.3} parent=47 // pred_check
        %p1072 = pneg %p1071
      $region50: #{tnet_forward.3} parent=47 // pred_check_branch
        %1074 = sbr.rel (%p1072) target = $region52
      $region51: #{tnet_forward.3} parent=47 // pred_region
        %v1077 = vcombine.low %v1049, %v1070
        %v1079 = vunpack.c.l.s4 1966171168
        %v1080 = vunpack.c.0.s8 %v1079
        %v1081 = vlaneseq
        %v1082 = vshrl.u32 %v1081, 7
        %v1083 = vsub.s32 %v1080, %v1082
        %v1084 = vrot.slane %v1077, %v1083
        %v1086 = vunpack.c.l.s4 1966171168
        %v1087 = vunpack.c.0.s8 %v1086
        %v1088 = vlaneseq
        %v1089 = vshrl.u32 %v1088, 7
        %v1090 = vsub.s32 %v1087, %v1089
        %v1091 = vrot.slane %v1084, %v1090
        %v1093 = vlaneseq
        %vm1094 = vcmp.ge.s32.totalorder %v1093, 0
        %vm1095 = vcmp.lt.s32.totalorder %v1093, 256
        %vm1096 = vmand %vm1094, %vm1095
        %1097 = vst.msk [vmem:[%s320] sm:$0x3] %vm1096, %v1091
      $region52: #{tnet_forward.3} parent=47 // pred_fallthru
        _
      %p1098 = scmp.gt.s32.totalorder %s25, 0
      // Predicated region
      $region53: #{tnet_forward.3} parent=47 // pred_check
        %p1099 = pneg %p1098
      $region54: #{tnet_forward.3} parent=47 // pred_check_branch
        %1101 = sbr.rel (%p1099) target = $region56
      $region55: #{tnet_forward.3} parent=47 // pred_region
        %v1102 = vld [vmem:[%s320] sm:$0x3]
        %v1105 = vcombine.low %v1049, %v1070
        %v1107 = vunpack.c.l.s4 1966171168
        %v1108 = vunpack.c.0.s8 %v1107
        %v1109 = vlaneseq
        %v1110 = vshrl.u32 %v1109, 7
        %v1111 = vsub.s32 %v1108, %v1110
        %v1112 = vrot.slane %v1105, %v1111
        %v1114 = vunpack.c.l.s4 1966171168
        %v1115 = vunpack.c.0.s8 %v1114
        %v1116 = vlaneseq
        %v1117 = vshrl.u32 %v1116, 7
        %v1118 = vsub.s32 %v1115, %v1117
        %v1119 = vrot.slane %v1112, %v1118
        %v1121 = vmax.f32 %v1102, %v1119
        %v1122 = vlaneseq
        %vm1123 = vcmp.ge.s32.totalorder %v1122, 0
        %vm1124 = vcmp.lt.s32.totalorder %v1122, 256
        %vm1125 = vmand %vm1123, %vm1124
        %1126 = vst.msk [vmem:[%s320] sm:$0x3] %vm1125, %v1121
      $region56: #{tnet_forward.3} parent=47 // pred_fallthru
        _
      %p1127 = scmp.lt.s32.totalorder %s23, 1
      %s1128 = scalar_select %p1127, %s23, 1
      %p1129 = scmp.lt.s32.totalorder %s24, 0
      %s1130 = scalar_select %p1129, %s24, 0
      %s1131 = smul.addr %s1130, 2
      %s1132 = smul.addr %s1128, 2
      %s1133 = sadd.s32 %s1131, %s1132
      %s1134 = scalar_lea.vmem %s7, %s1133
      // Predicated region
      $region57: #{tnet_forward.3} parent=47 // pred_check
        %p1135 = pneg %p213
      $region58: #{tnet_forward.3} parent=47 // pred_check_branch
        %1137 = sbr.rel (%p1135) target = $region60
      $region59: #{tnet_forward.3} parent=47 // pred_region
        _
      $region60: #{tnet_forward.3} parent=47 // pred_fallthru
        _
    $region48: #{tnet_forward.3} parent=5 // pred_fallthru
      _
    %p1138 = scmp.le.s32.totalorder 2, %s13
    // Predicated region
    $region61: #{tnet_forward.3} parent=5 // pred_check
      %p1139 = pneg %p1138
    $region62: #{tnet_forward.3} parent=5 // pred_check_branch
      %1141 = sbr.rel (%p1139) target = $region64
    $region63: #{tnet_forward.3} parent=5 // pred_region
      %s1142 = ssub.s32 %s13, 2
      // Predicated region
      $region65: #{tnet_forward.3} parent=63 // pred_check
        %p1143 = pneg %p219
      $region66: #{tnet_forward.3} parent=63 // pred_check_branch
        %1145 = sbr.rel (%p1143) target = $region68
      $region67: #{tnet_forward.3} parent=63 // pred_region
        %p1146 = scmp.lt.s32.totalorder %s26, 1
        %s1147 = scalar_select %p1146, %s26, 1
        %p1148 = scmp.lt.s32.totalorder %s27, 0
        %s1149 = scalar_select %p1148, %s27, 0
        %s1150 = smul.addr %s1149, 2
        %s1151 = smul.addr %s1147, 2
        %s1152 = sadd.s32 %s1150, %s1151
        %s1153 = scalar_lea.vmem %s7, %s1152
      $region68: #{tnet_forward.3} parent=63 // pred_fallthru
        _
    $region64: #{tnet_forward.3} parent=5 // pred_fallthru
      _
  $region6: #{tnet_forward.3} parent=0 // loop_footer
    %s17 = sadd.s32 1, %s13
  $region7: #{tnet_forward.3} parent=0 // loop_footer_branch
    %12 = sbr.rel target = $region3
  $region8: #{tnet_forward.3} parent=0 // loop_exit
    _

</llo_original>
